<compile_context>
chip_gen: v6e
topology: v6e:2x2x1
jax: 0.10.0
libtpu: 0.0.40
codegen_flags: <defaults>
</compile_context>

<pallas_src>
import math

import jax
import jax.numpy as jnp
import numpy as np
from jax.experimental import pallas as pl
from jax.experimental.pallas import tpu as pltpu

NEG_INF = -1e30  # finite stand-in for float('-inf') key-padding fill


def _choose_l_tile(L, max_tile=512):
    """Largest tile <= max_tile that divides L and respects sublane granularity."""
    if L <= max_tile:
        return L
    for t in range(max_tile, 7, -1):
        if L % t == 0 and t % 8 == 0:
            return t
    return L  # fallback: single full-L tile


def _fusion_kernel(nhead: int, head_dim: int):
    """Returns the per-(batch, L-tile) fused attention kernel."""
    H, D = nhead, head_dim
    inv_sqrt_d = 1.0 / math.sqrt(head_dim)

    def kernel(tgt_ref, qpos_ref, mem_ref, pos_ref, bias_ref,
               wqT_ref, wkT_ref, wvT_ref, woT_ref,
               bq_ref, bk_ref, bv_ref, bo_ref, out_ref):
        tl = tgt_ref.shape[1]
        s = mem_ref.shape[1]
        e = tgt_ref.shape[2]

        tgt = tgt_ref[0]                                     # (TL, E) f32
        # with_pos_embed adds in f32 (VPU), operands cast to bf16 only for MXU.
        q_in = (tgt + qpos_ref[0]).astype(jnp.bfloat16)      # (TL, E)
        k_in = (mem_ref[0] + pos_ref[0]).astype(jnp.bfloat16)  # (S, E)
        v_in = mem_ref[0].astype(jnp.bfloat16)               # (S, E)

        # Full-width input projections: bf16 MXU operands, f32 accumulation,
        # weights already transposed on the host (x @ W^T == x @ WT).
        q = jnp.dot(q_in, wqT_ref[...], preferred_element_type=jnp.float32) + bq_ref[...]
        k = jnp.dot(k_in, wkT_ref[...], preferred_element_type=jnp.float32) + bk_ref[...]
        v = jnp.dot(v_in, wvT_ref[...], preferred_element_type=jnp.float32) + bv_ref[...]
        q = q * inv_sqrt_d                                   # scale once, not per head

        # Head-major layouts for the head-batched attention matmuls.
        qh = pltpu.einshape("lhd->hld", q.reshape(tl, H, D)).astype(jnp.bfloat16)
        kh = pltpu.einshape("shd->hsd", k.reshape(s, H, D)).astype(jnp.bfloat16)
        vh = pltpu.einshape("shd->hsd", v.reshape(s, H, D)).astype(jnp.bfloat16)

        # Scores for all heads in one batched matmul, f32 accumulator.
        scores = jnp.einsum("hld,hsd->hls", qh, kh,
                            preferred_element_type=jnp.float32)   # (H, TL, S)
        # Additive key-padding bias (0 / NEG_INF), precomputed in the wrapper,
        # applied once to the f32 accumulator (bf16-safe).
        scores = scores + bias_ref[0]                         # (1, S) broadcast

        # Softmax over keys (f32 VPU/EUP math).
        m = jnp.max(scores, axis=-1, keepdims=True)
        p = jnp.exp(scores - m)
        denom = jnp.sum(p, axis=-1, keepdims=True)
        attn = p * pl.reciprocal(denom, approx=True)

        # Context for all heads in one batched matmul.
        ctx = jnp.einsum("hls,hsd->hld", attn.astype(jnp.bfloat16), vh,
                         preferred_element_type=jnp.float32)  # (H, TL, D)

        # Concatenate heads back to (TL, E) and do ONE full-width out projection.
        ctx = pltpu.einshape("hld->lhd", ctx.astype(jnp.bfloat16)).reshape(tl, e)
        tgt2 = jnp.dot(ctx, woT_ref[...], preferred_element_type=jnp.float32) + bo_ref[...]

        # tgt = tgt * tgt2 ; tgt = tgt * tgt2  (kept fused with the store pass)
        out_ref[0] = (tgt * tgt2 * tgt2).astype(out_ref.dtype)

    return kernel


def vision_language_fusion(tgt, memory, memory_key_padding_mask, pos, query_pos,
                           params, nhead, max_l_tile=512):
    L, N, E = tgt.shape
    S = memory.shape[0]
    assert E % nhead == 0
    head_dim = E // nhead

    TL = _choose_l_tile(L, max_l_tile)
    assert L % TL == 0
    n_l = L // TL

    f32, bf16 = jnp.float32, jnp.bfloat16

    # seq-first -> batch-first; activations stay f32 (needed for the final
    # elementwise product and for f32 adds on v5e).
    tgt_b = jnp.transpose(tgt, (1, 0, 2)).astype(f32)
    qpos_b = jnp.transpose(query_pos, (1, 0, 2)).astype(f32)
    mem_b = jnp.transpose(memory, (1, 0, 2)).astype(f32)
    pos_b = jnp.transpose(pos, (1, 0, 2)).astype(f32)

    # Hoisted additive key-padding bias: 0 keep, NEG_INF masked.
    if memory_key_padding_mask is None:
        bias_b = jnp.zeros((N, 1, S), f32)
    else:
        bias_b = jnp.where(memory_key_padding_mask, NEG_INF, 0.0).astype(f32).reshape(N, 1, S)

    # Pre-transposed, bf16 weights (MXU operands only); f32 biases.
    wqT = params["wq"].T.astype(bf16)
    wkT = params["wk"].T.astype(bf16)
    wvT = params["wv"].T.astype(bf16)
    woT = params["wo"].T.astype(bf16)
    bq = params["bq"].reshape(1, E).astype(f32)
    bk = params["bk"].reshape(1, E).astype(f32)
    bv = params["bv"].reshape(1, E).astype(f32)
    bo = params["bo"].reshape(1, E).astype(f32)

    lq_spec = pl.BlockSpec((1, TL, E), lambda b, l: (b, l, 0))   # tiled over L
    kv_spec = pl.BlockSpec((1, S, E), lambda b, l: (b, 0, 0))    # constant over L
    w_spec = pl.BlockSpec((E, E), lambda b, l: (0, 0))           # resident weights
    b_spec = pl.BlockSpec((1, E), lambda b, l: (0, 0))

    out_b = pl.pallas_call(
        _fusion_kernel(nhead, head_dim),
        out_shape=jax.ShapeDtypeStruct((N, L, E), jnp.float32),
        grid_spec=pltpu.PrefetchScalarGridSpec(
            num_scalar_prefetch=0,
            grid=(N, n_l),
            in_specs=[
                lq_spec,                                        # tgt
                lq_spec,                                        # query_pos
                kv_spec,                                        # memory
                kv_spec,                                        # pos
                pl.BlockSpec((1, 1, S), lambda b, l: (b, 0, 0)),  # mask bias
                w_spec, w_spec, w_spec, w_spec,                 # WqT, WkT, WvT, WoT
                b_spec, b_spec, b_spec, b_spec,                 # bq, bk, bv, bo
            ],
            out_specs=pl.BlockSpec((1, TL, E), lambda b, l: (b, l, 0)),
        ),
        compiler_params=pltpu.CompilerParams(
            dimension_semantics=("parallel", "parallel"),
            vmem_limit_bytes=32 * 1024 * 1024,                  # fits v7x's 64 MiB VMEM
        ),
    )(tgt_b, qpos_b, mem_b, pos_b, bias_b, wqT, wkT, wvT, woT, bq, bk, bv, bo)

    return jnp.transpose(out_b, (1, 0, 2))  # back to (L, N, E)


def reference_forward(tgt, memory, memory_key_padding_mask, pos, query_pos,
                      params, nhead, mxu_dtype=jnp.float32):
    """Pure-JAX replica of nn.MultiheadAttention forward (dropout=0).

    With mxu_dtype=float32 this is the exact PyTorch-semantics reference.
    With mxu_dtype=bfloat16 it rounds MXU operands exactly like the kernel,
    so the comparison isolates kernel bugs from expected bf16 rounding.
    """
    L, N, E = tgt.shape
    S = memory.shape[0]
    H, Dh = nhead, E // nhead
    c = lambda x: x.astype(mxu_dtype).astype(jnp.float32)

    q_in = (tgt + query_pos).astype(jnp.float32)
    k_in = (memory + pos).astype(jnp.float32)
    v_in = memory.astype(jnp.float32)

    Q = jnp.einsum("lne,ef->lnf", c(q_in), c(params["wq"].T)) + params["bq"]
    K = jnp.einsum("sne,ef->snf", c(k_in), c(params["wk"].T)) + params["bk"]
    V = jnp.einsum("sne,ef->snf", c(v_in), c(params["wv"].T)) + params["bv"]
    Q = Q / math.sqrt(Dh)

    Qh = Q.reshape(L, N, H, Dh).transpose(1, 2, 0, 3)  # (N, H, L, Dh)
    Kh = K.reshape(S, N, H, Dh).transpose(1, 2, 0, 3)  # (N, H, S, Dh)
    Vh = V.reshape(S, N, H, Dh).transpose(1, 2, 0, 3)

    scores = jnp.einsum("nhld,nhsd->nhls", c(Qh), c(Kh))
    if memory_key_padding_mask is not None:
        scores = scores + jnp.where(memory_key_padding_mask, NEG_INF, 0.0)[:, None, None, :]
    attn = jax.nn.softmax(scores, axis=-1)
    ctx = jnp.einsum("nhls,nhsd->nhld", c(attn), c(Vh))     # (N, H, L, Dh)
    ctx = ctx.transpose(2, 0, 1, 3).reshape(L, N, E)        # concat heads
    tgt2 = jnp.einsum("lne,ef->lnf", c(ctx), c(params["wo"].T)) + params["bo"]
    return tgt * tgt2 * tgt2


def make_params(key, d_model):
    ks = jax.random.split(key, 8)
    s = 1.0 / math.sqrt(d_model)
    return {
        "wq": jax.random.normal(ks[0], (d_model, d_model), jnp.float32) * s,
        "wk": jax.random.normal(ks[1], (d_model, d_model), jnp.float32) * s,
        "wv": jax.random.normal(ks[2], (d_model, d_model), jnp.float32) * s,
        "wo": jax.random.normal(ks[3], (d_model, d_model), jnp.float32) * s,
        "bq": jax.random.normal(ks[4], (d_model,), jnp.float32) * 0.1,
        "bk": jax.random.normal(ks[5], (d_model,), jnp.float32) * 0.1,
        "bv": jax.random.normal(ks[6], (d_model,), jnp.float32) * 0.1,
        "bo": jax.random.normal(ks[7], (d_model,), jnp.float32) * 0.1,
    }


if __name__ == "__main__":
    # Small, forward-consistent shapes.
    d_model, nhead = 32, 4
    L, S, N = 8, 16, 2         # tgt length, memory length, batch

    root = jax.random.PRNGKey(0)
    kp, kt, km, kpp, kqp = jax.random.split(root, 5)

    params = make_params(kp, d_model)
    tgt = jax.random.normal(kt, (L, N, d_model), jnp.float32)
    memory = jax.random.normal(km, (S, N, d_model), jnp.float32)
    pos = jax.random.normal(kpp, (S, N, d_model), jnp.float32)
    query_pos = jax.random.normal(kqp, (L, N, d_model), jnp.float32)
    # batch 0: nothing masked; batch 1: last 4 memory positions masked.
    memory_key_padding_mask = jnp.arange(S)[None, :] >= jnp.array([S, S - 4])[:, None]

    out = vision_language_fusion(tgt, memory, memory_key_padding_mask,
                                 pos, query_pos, params, nhead)
    out = jax.block_until_ready(out)

    # Compare against the reference with the same bf16 MXU-operand rounding the
    # kernel uses (accumulation stays f32 in both); tolerance covers the
    # approximate-reciprocal softmax normalization.
    ref = reference_forward(tgt, memory, memory_key_padding_mask,
                            pos, query_pos, params, nhead,
                            mxu_dtype=jnp.bfloat16)
    np.testing.assert_allclose(np.asarray(out), np.asarray(ref),
                               rtol=2e-2, atol=2e-2)
    print("KERNEL_OK")
</pallas_src>

<mosaic_0001>
module attributes {stable_mosaic.version = 11 : i64} {
  func.func @kernel(%arg0: i32, %arg1: i32, %arg2: memref<1x8x32xf32, #tpu.memory_space<vmem>>, %arg3: memref<1x8x32xf32, #tpu.memory_space<vmem>>, %arg4: memref<1x16x32xf32, #tpu.memory_space<vmem>>, %arg5: memref<1x16x32xf32, #tpu.memory_space<vmem>>, %arg6: memref<1x1x16xf32, #tpu.memory_space<vmem>>, %arg7: memref<32x32xbf16, #tpu.memory_space<vmem>>, %arg8: memref<32x32xbf16, #tpu.memory_space<vmem>>, %arg9: memref<32x32xbf16, #tpu.memory_space<vmem>>, %arg10: memref<32x32xbf16, #tpu.memory_space<vmem>>, %arg11: memref<1x32xf32, #tpu.memory_space<vmem>>, %arg12: memref<1x32xf32, #tpu.memory_space<vmem>>, %arg13: memref<1x32xf32, #tpu.memory_space<vmem>>, %arg14: memref<1x32xf32, #tpu.memory_space<vmem>>, %arg15: memref<1x8x32xf32, #tpu.memory_space<vmem>>) attributes {dimension_semantics = [#tpu.dimension_semantics<parallel>, #tpu.dimension_semantics<parallel>], iteration_bounds = array<i64: 2, 1>, scalar_prefetch = 0 : i64, scratch_operands = 0 : i64, tpu.core_type = #tpu.core_type<tc>, window_params = [{transform_indices = @transform_0, window_bounds = array<i64: 1, 8, 32>}, {transform_indices = @transform_1, window_bounds = array<i64: 1, 8, 32>}, {transform_indices = @transform_2, window_bounds = array<i64: 1, 16, 32>}, {transform_indices = @transform_3, window_bounds = array<i64: 1, 16, 32>}, {transform_indices = @transform_4, window_bounds = array<i64: 1, 1, 16>}, {pipeline_mode = #tpu.pipeline_mode<synchronous>, transform_indices = @transform_5, window_bounds = array<i64: 32, 32>}, {pipeline_mode = #tpu.pipeline_mode<synchronous>, transform_indices = @transform_6, window_bounds = array<i64: 32, 32>}, {pipeline_mode = #tpu.pipeline_mode<synchronous>, transform_indices = @transform_7, window_bounds = array<i64: 32, 32>}, {pipeline_mode = #tpu.pipeline_mode<synchronous>, transform_indices = @transform_8, window_bounds = array<i64: 32, 32>}, {pipeline_mode = #tpu.pipeline_mode<synchronous>, transform_indices = @transform_9, window_bounds = array<i64: 1, 32>}, {pipeline_mode = #tpu.pipeline_mode<synchronous>, transform_indices = @transform_10, window_bounds = array<i64: 1, 32>}, {pipeline_mode = #tpu.pipeline_mode<synchronous>, transform_indices = @transform_11, window_bounds = array<i64: 1, 32>}, {pipeline_mode = #tpu.pipeline_mode<synchronous>, transform_indices = @transform_12, window_bounds = array<i64: 1, 32>}, {transform_indices = @transform_13, window_bounds = array<i64: 1, 8, 32>}]} {
    %c0 = arith.constant 0 : index
    %c0_0 = arith.constant 0 : index
    %c0_1 = arith.constant 0 : index
    %0 = vector.load %arg2[%c0, %c0_0, %c0_1] : memref<1x8x32xf32, #tpu.memory_space<vmem>>, vector<1x8x32xf32>
    %1 = vector.shape_cast %0 : vector<1x8x32xf32> to vector<8x32xf32>
    %c0_2 = arith.constant 0 : index
    %c0_3 = arith.constant 0 : index
    %c0_4 = arith.constant 0 : index
    %2 = vector.load %arg3[%c0_2, %c0_3, %c0_4] : memref<1x8x32xf32, #tpu.memory_space<vmem>>, vector<1x8x32xf32>
    %3 = vector.shape_cast %2 : vector<1x8x32xf32> to vector<8x32xf32>
    %4 = arith.addf %1, %3 : vector<8x32xf32>
    %5 = arith.truncf %4 : vector<8x32xf32> to vector<8x32xbf16>
    %c0_5 = arith.constant 0 : index
    %c0_6 = arith.constant 0 : index
    %c0_7 = arith.constant 0 : index
    %6 = vector.load %arg4[%c0_5, %c0_6, %c0_7] : memref<1x16x32xf32, #tpu.memory_space<vmem>>, vector<1x16x32xf32>
    %7 = vector.shape_cast %6 : vector<1x16x32xf32> to vector<16x32xf32>
    %c0_8 = arith.constant 0 : index
    %c0_9 = arith.constant 0 : index
    %c0_10 = arith.constant 0 : index
    %8 = vector.load %arg5[%c0_8, %c0_9, %c0_10] : memref<1x16x32xf32, #tpu.memory_space<vmem>>, vector<1x16x32xf32>
    %9 = vector.shape_cast %8 : vector<1x16x32xf32> to vector<16x32xf32>
    %10 = arith.addf %7, %9 : vector<16x32xf32>
    %11 = arith.truncf %10 : vector<16x32xf32> to vector<16x32xbf16>
    %c0_11 = arith.constant 0 : index
    %c0_12 = arith.constant 0 : index
    %c0_13 = arith.constant 0 : index
    %12 = vector.load %arg4[%c0_11, %c0_12, %c0_13] : memref<1x16x32xf32, #tpu.memory_space<vmem>>, vector<1x16x32xf32>
    %13 = vector.shape_cast %12 : vector<1x16x32xf32> to vector<16x32xf32>
    %14 = arith.truncf %13 : vector<16x32xf32> to vector<16x32xbf16>
    %c0_14 = arith.constant 0 : index
    %c0_15 = arith.constant 0 : index
    %15 = vector.load %arg7[%c0_14, %c0_15] : memref<32x32xbf16, #tpu.memory_space<vmem>>, vector<32x32xbf16>
    %cst = arith.constant dense<0.000000e+00> : vector<8x32xf32>
    %16 = tpu.matmul %5, %15, %cst {dimension_numbers = #tpu.dot_dimension_numbers<[1], [0], [0], [1], [0, 0, 1, 1], [], []>} : vector<8x32xbf16>, vector<32x32xbf16>, vector<8x32xf32> -> vector<8x32xf32>
    %c0_16 = arith.constant 0 : index
    %c0_17 = arith.constant 0 : index
    %17 = vector.load %arg11[%c0_16, %c0_17] : memref<1x32xf32, #tpu.memory_space<vmem>>, vector<1x32xf32>
    %18 = vector.broadcast %17 : vector<1x32xf32> to vector<8x32xf32>
    %19 = arith.addf %16, %18 : vector<8x32xf32>
    %c0_18 = arith.constant 0 : index
    %c0_19 = arith.constant 0 : index
    %20 = vector.load %arg8[%c0_18, %c0_19] : memref<32x32xbf16, #tpu.memory_space<vmem>>, vector<32x32xbf16>
    %cst_20 = arith.constant dense<0.000000e+00> : vector<16x32xf32>
    %21 = tpu.matmul %11, %20, %cst_20 {dimension_numbers = #tpu.dot_dimension_numbers<[1], [0], [0], [1], [0, 0, 1, 1], [], []>} : vector<16x32xbf16>, vector<32x32xbf16>, vector<16x32xf32> -> vector<16x32xf32>
    %c0_21 = arith.constant 0 : index
    %c0_22 = arith.constant 0 : index
    %22 = vector.load %arg12[%c0_21, %c0_22] : memref<1x32xf32, #tpu.memory_space<vmem>>, vector<1x32xf32>
    %23 = vector.broadcast %22 : vector<1x32xf32> to vector<16x32xf32>
    %24 = arith.addf %21, %23 : vector<16x32xf32>
    %c0_23 = arith.constant 0 : index
    %c0_24 = arith.constant 0 : index
    %25 = vector.load %arg9[%c0_23, %c0_24] : memref<32x32xbf16, #tpu.memory_space<vmem>>, vector<32x32xbf16>
    %cst_25 = arith.constant dense<0.000000e+00> : vector<16x32xf32>
    %26 = tpu.matmul %14, %25, %cst_25 {dimension_numbers = #tpu.dot_dimension_numbers<[1], [0], [0], [1], [0, 0, 1, 1], [], []>} : vector<16x32xbf16>, vector<32x32xbf16>, vector<16x32xf32> -> vector<16x32xf32>
    %c0_26 = arith.constant 0 : index
    %c0_27 = arith.constant 0 : index
    %27 = vector.load %arg13[%c0_26, %c0_27] : memref<1x32xf32, #tpu.memory_space<vmem>>, vector<1x32xf32>
    %28 = vector.broadcast %27 : vector<1x32xf32> to vector<16x32xf32>
    %29 = arith.addf %26, %28 : vector<16x32xf32>
    %cst_28 = arith.constant 0.353553385 : f32
    %30 = vector.broadcast %cst_28 : f32 to vector<8x32xf32>
    %31 = arith.mulf %19, %30 : vector<8x32xf32>
    %32 = vector.shape_cast %31 : vector<8x32xf32> to vector<8x4x8xf32>
    %33 = tpu.transpose %32, [1, 0, 2] : vector<8x4x8xf32> -> vector<4x8x8xf32>
    %34 = arith.truncf %33 : vector<4x8x8xf32> to vector<4x8x8xbf16>
    %35 = vector.shape_cast %24 : vector<16x32xf32> to vector<16x4x8xf32>
    %36 = tpu.transpose %35, [1, 0, 2] : vector<16x4x8xf32> -> vector<4x16x8xf32>
    %37 = arith.truncf %36 : vector<4x16x8xf32> to vector<4x16x8xbf16>
    %38 = vector.shape_cast %29 : vector<16x32xf32> to vector<16x4x8xf32>
    %39 = tpu.transpose %38, [1, 0, 2] : vector<16x4x8xf32> -> vector<4x16x8xf32>
    %40 = arith.truncf %39 : vector<4x16x8xf32> to vector<4x16x8xbf16>
    "tpu.trace_start"() <{level = 10 : i32, message = "hld,hsd->hls"}> : () -> ()
    %cst_29 = arith.constant dense<0.000000e+00> : vector<4x8x16xf32>
    %41 = tpu.matmul %34, %37, %cst_29 {dimension_numbers = #tpu.dot_dimension_numbers<[2], [2], [1], [1], [0, 0, 0, 1, 1, 1], [0], [0]>} : vector<4x8x8xbf16>, vector<4x16x8xbf16>, vector<4x8x16xf32> -> vector<4x8x16xf32>
    "tpu.trace_stop"() : () -> ()
    %c0_30 = arith.constant 0 : index
    %c0_31 = arith.constant 0 : index
    %c0_32 = arith.constant 0 : index
    %42 = vector.load %arg6[%c0_30, %c0_31, %c0_32] : memref<1x1x16xf32, #tpu.memory_space<vmem>>, vector<1x1x16xf32>
    %43 = vector.shape_cast %42 : vector<1x1x16xf32> to vector<1x16xf32>
    %44 = vector.shape_cast %43 : vector<1x16xf32> to vector<1x1x16xf32>
    %45 = vector.broadcast %44 : vector<1x1x16xf32> to vector<4x8x16xf32>
    %46 = arith.addf %41, %45 : vector<4x8x16xf32>
    %cst_33 = arith.constant dense<0xFF800000> : vector<4x8xf32>
    %47 = vector.multi_reduction <maximumf>, %46, %cst_33 [2] : vector<4x8x16xf32> to vector<4x8xf32>
    %48 = vector.shape_cast %47 : vector<4x8xf32> to vector<4x8x1xf32>
    %49 = vector.broadcast %48 : vector<4x8x1xf32> to vector<4x8x16xf32>
    %50 = arith.subf %46, %49 : vector<4x8x16xf32>
    %51 = math.exp %50 : vector<4x8x16xf32>
    %cst_34 = arith.constant dense<0.000000e+00> : vector<4x8xf32>
    %52 = vector.multi_reduction <add>, %51, %cst_34 [2] : vector<4x8x16xf32> to vector<4x8xf32>
    %53 = vector.shape_cast %52 : vector<4x8xf32> to vector<4x8x1xf32>
    %54 = tpu.reciprocal %53 {approx = true} : vector<4x8x1xf32> -> vector<4x8x1xf32>
    %55 = vector.broadcast %54 : vector<4x8x1xf32> to vector<4x8x16xf32>
    %56 = arith.mulf %51, %55 : vector<4x8x16xf32>
    %57 = arith.truncf %56 : vector<4x8x16xf32> to vector<4x8x16xbf16>
    "tpu.trace_start"() <{level = 10 : i32, message = "hls,hsd->hld"}> : () -> ()
    %cst_35 = arith.constant dense<0.000000e+00> : vector<4x8x8xf32>
    %58 = tpu.matmul %57, %40, %cst_35 {dimension_numbers = #tpu.dot_dimension_numbers<[2], [1], [1], [2], [0, 0, 0, 1, 1, 2], [0], [0]>} : vector<4x8x16xbf16>, vector<4x16x8xbf16>, vector<4x8x8xf32> -> vector<4x8x8xf32>
    "tpu.trace_stop"() : () -> ()
    %59 = arith.truncf %58 : vector<4x8x8xf32> to vector<4x8x8xbf16>
    %60 = tpu.transpose %59, [1, 0, 2] : vector<4x8x8xbf16> -> vector<8x4x8xbf16>
    %61 = vector.shape_cast %60 : vector<8x4x8xbf16> to vector<8x32xbf16>
    %c0_36 = arith.constant 0 : index
    %c0_37 = arith.constant 0 : index
    %62 = vector.load %arg10[%c0_36, %c0_37] : memref<32x32xbf16, #tpu.memory_space<vmem>>, vector<32x32xbf16>
    %cst_38 = arith.constant dense<0.000000e+00> : vector<8x32xf32>
    %63 = tpu.matmul %61, %62, %cst_38 {dimension_numbers = #tpu.dot_dimension_numbers<[1], [0], [0], [1], [0, 0, 1, 1], [], []>} : vector<8x32xbf16>, vector<32x32xbf16>, vector<8x32xf32> -> vector<8x32xf32>
    %c0_39 = arith.constant 0 : index
    %c0_40 = arith.constant 0 : index
    %64 = vector.load %arg14[%c0_39, %c0_40] : memref<1x32xf32, #tpu.memory_space<vmem>>, vector<1x32xf32>
    %65 = vector.broadcast %64 : vector<1x32xf32> to vector<8x32xf32>
    %66 = arith.addf %63, %65 : vector<8x32xf32>
    %67 = arith.mulf %1, %66 : vector<8x32xf32>
    %68 = arith.mulf %67, %66 : vector<8x32xf32>
    %c0_41 = arith.constant 0 : index
    %c0_42 = arith.constant 0 : index
    %c0_43 = arith.constant 0 : index
    %69 = vector.load %arg15[%c0_41, %c0_42, %c0_43] : memref<1x8x32xf32, #tpu.memory_space<vmem>>, vector<1x8x32xf32>
    %70 = vector.shape_cast %69 : vector<1x8x32xf32> to vector<8x32xf32>
    %71 = vector.shape_cast %68 : vector<8x32xf32> to vector<1x8x32xf32>
    tpu.vector_store %arg15[%c0_41, %c0_42, %c0_43], %71 {strides = array<i32>} : memref<1x8x32xf32, #tpu.memory_space<vmem>>, vector<1x8x32xf32>,
    return
  }
  func.func @transform_0(%arg0: i32, %arg1: i32) -> (i32, i32, i32) {
    %c0_i32 = arith.constant 0 : i32
    %c0_i32_0 = arith.constant 0 : i32
    return %arg0, %arg1, %c0_i32 : i32, i32, i32
  }
  func.func @transform_1(%arg0: i32, %arg1: i32) -> (i32, i32, i32) {
    %c0_i32 = arith.constant 0 : i32
    %c0_i32_0 = arith.constant 0 : i32
    return %arg0, %arg1, %c0_i32 : i32, i32, i32
  }
  func.func @transform_2(%arg0: i32, %arg1: i32) -> (i32, i32, i32) {
    %c0_i32 = arith.constant 0 : i32
    %c0_i32_0 = arith.constant 0 : i32
    %c0_i32_1 = arith.constant 0 : i32
    return %arg0, %c0_i32, %c0_i32_0 : i32, i32, i32
  }
  func.func @transform_3(%arg0: i32, %arg1: i32) -> (i32, i32, i32) {
    %c0_i32 = arith.constant 0 : i32
    %c0_i32_0 = arith.constant 0 : i32
    %c0_i32_1 = arith.constant 0 : i32
    return %arg0, %c0_i32, %c0_i32_0 : i32, i32, i32
  }
  func.func @transform_4(%arg0: i32, %arg1: i32) -> (i32, i32, i32) {
    %c0_i32 = arith.constant 0 : i32
    %c0_i32_0 = arith.constant 0 : i32
    %c0_i32_1 = arith.constant 0 : i32
    return %arg0, %c0_i32, %c0_i32_0 : i32, i32, i32
  }
  func.func @transform_5(%arg0: i32, %arg1: i32) -> (i32, i32) {
    %c0_i32 = arith.constant 0 : i32
    %c0_i32_0 = arith.constant 0 : i32
    %c0_i32_1 = arith.constant 0 : i32
    return %c0_i32, %c0_i32_0 : i32, i32
  }
  func.func @transform_6(%arg0: i32, %arg1: i32) -> (i32, i32) {
    %c0_i32 = arith.constant 0 : i32
    %c0_i32_0 = arith.constant 0 : i32
    %c0_i32_1 = arith.constant 0 : i32
    return %c0_i32, %c0_i32_0 : i32, i32
  }
  func.func @transform_7(%arg0: i32, %arg1: i32) -> (i32, i32) {
    %c0_i32 = arith.constant 0 : i32
    %c0_i32_0 = arith.constant 0 : i32
    %c0_i32_1 = arith.constant 0 : i32
    return %c0_i32, %c0_i32_0 : i32, i32
  }
  func.func @transform_8(%arg0: i32, %arg1: i32) -> (i32, i32) {
    %c0_i32 = arith.constant 0 : i32
    %c0_i32_0 = arith.constant 0 : i32
    %c0_i32_1 = arith.constant 0 : i32
    return %c0_i32, %c0_i32_0 : i32, i32
  }
  func.func @transform_9(%arg0: i32, %arg1: i32) -> (i32, i32) {
    %c0_i32 = arith.constant 0 : i32
    %c0_i32_0 = arith.constant 0 : i32
    %c0_i32_1 = arith.constant 0 : i32
    return %c0_i32, %c0_i32_0 : i32, i32
  }
  func.func @transform_10(%arg0: i32, %arg1: i32) -> (i32, i32) {
    %c0_i32 = arith.constant 0 : i32
    %c0_i32_0 = arith.constant 0 : i32
    %c0_i32_1 = arith.constant 0 : i32
    return %c0_i32, %c0_i32_0 : i32, i32
  }
  func.func @transform_11(%arg0: i32, %arg1: i32) -> (i32, i32) {
    %c0_i32 = arith.constant 0 : i32
    %c0_i32_0 = arith.constant 0 : i32
    %c0_i32_1 = arith.constant 0 : i32
    return %c0_i32, %c0_i32_0 : i32, i32
  }
  func.func @transform_12(%arg0: i32, %arg1: i32) -> (i32, i32) {
    %c0_i32 = arith.constant 0 : i32
    %c0_i32_0 = arith.constant 0 : i32
    %c0_i32_1 = arith.constant 0 : i32
    return %c0_i32, %c0_i32_0 : i32, i32
  }
  func.func @transform_13(%arg0: i32, %arg1: i32) -> (i32, i32, i32) {
    %c0_i32 = arith.constant 0 : i32
    %c0_i32_0 = arith.constant 0 : i32
    return %arg0, %arg1, %c0_i32 : i32, i32, i32
  }
}

</mosaic_0001>

<llo_original>
// kernel: tpu_custom_call.1
$region0: #{tpu_custom_call.1}
  #allocation0 [shape = 'u32[]', space=smem, size = 0x4, offset = 0x4, fixed_abs, tag = 'smem constant byte address 0x4 - core index']
  #allocation1 [shape = 'u32[144,128]{1,0:T(1,128)}', space=vmem, size = 0x12000, scoped, tag = 'internal scratch']
  %s0 = inlined_call_operand.hbm [shape: f32[2,8,32], index: 0, kind: input, shape index: {}]
  %s1 = inlined_call_operand.hbm [shape: f32[2,8,32], index: 1, kind: input, shape index: {}]
  %s2 = inlined_call_operand.hbm [shape: f32[2,16,32], index: 2, kind: input, shape index: {}]
  %s3 = inlined_call_operand.hbm [shape: f32[2,16,32], index: 3, kind: input, shape index: {}]
  %s4 = inlined_call_operand.vmem [shape: f32[2,1,16], index: 4, kind: input, shape index: {}]
  %s5 = inlined_call_operand.hbm [shape: bf16[32,32], index: 5, kind: input, shape index: {}]
  %s6 = inlined_call_operand.hbm [shape: bf16[32,32], index: 6, kind: input, shape index: {}]
  %s7 = inlined_call_operand.hbm [shape: bf16[32,32], index: 7, kind: input, shape index: {}]
  %s8 = inlined_call_operand.hbm [shape: bf16[32,32], index: 8, kind: input, shape index: {}]
  %s9 = inlined_call_operand.vmem [shape: f32[1,32], index: 9, kind: input, shape index: {}]
  %s10 = inlined_call_operand.vmem [shape: f32[1,32], index: 10, kind: input, shape index: {}]
  %s11 = inlined_call_operand.vmem [shape: f32[1,32], index: 11, kind: input, shape index: {}]
  %s12 = inlined_call_operand.vmem [shape: f32[1,32], index: 12, kind: input, shape index: {}]
  %s13 = inlined_call_operand.hbm [shape: f32[2,8,32], index: 13, kind: output, shape index: {}]
  %s14 = sld [smem:[#allocation0]]
  $region117: #{tpu_custom_call.1} parent=0
    _
  %s16 = ssub.s32 1, %s14
  %s17 = scalar_select 0, %s16, %s14
  $region1: #{tpu_custom_call.1} parent=0
    #allocation2 [shape = 'u8[8192]{0}', space=vmem, size = 0x2000, scoped, tag = 'input window, operand 0']
    #allocation3 [shape = 's32[2]{0}', space=sflag, size = 0x8, scoped, tag = 'scoped memory for tpu_custom_call.1']
    #allocation4 [shape = 's32[2]{0}', space=sflag, size = 0x8, scoped, tag = 'scoped memory for tpu_custom_call.1']
    #allocation5 [shape = 'u8[8192]{0}', space=vmem, size = 0x2000, scoped, tag = 'input window, operand 1']
    #allocation6 [shape = 's32[2]{0}', space=sflag, size = 0x8, scoped, tag = 'scoped memory for tpu_custom_call.1']
    #allocation7 [shape = 'u8[16384]{0}', space=vmem, size = 0x4000, scoped, tag = 'input window, operand 2']
    #allocation8 [shape = 'u8[16384]{0}', space=vmem, size = 0x4000, scoped, tag = 'input window, operand 3']
    #allocation9 [shape = 's32[2]{0}', space=sflag, size = 0x8, scoped, tag = 'scoped memory for tpu_custom_call.1']
    #allocation10 [shape = 'u8[8192]{0}', space=vmem, size = 0x2000, scoped, tag = 'input window, operand 5, single buffered']
    #allocation11 [shape = 'u8[8192]{0}', space=vmem, size = 0x2000, scoped, tag = 'input window, operand 6, single buffered']
    #allocation12 [shape = 's32[1]{0}', space=sflag, size = 0x4, scoped, tag = 'scoped memory for tpu_custom_call.1']
    #allocation13 [shape = 'u8[8192]{0}', space=vmem, size = 0x2000, scoped, tag = 'input window, operand 7, single buffered']
    #allocation14 [shape = 'u8[8192]{0}', space=vmem, size = 0x2000, scoped, tag = 'input window, operand 8, single buffered']
    #allocation15 [shape = 's32[1]{0}', space=sflag, size = 0x4, scoped, tag = 'scoped memory for tpu_custom_call.1']
    #allocation16 [shape = 'u8[8192]{0}', space=vmem, size = 0x2000, scoped, tag = 'output window, operand 0']
    %18 = vsyncpa [#allocation3], 0
    %s19 = scalar_lea.sflag [#allocation3], 1
    %20 = vsyncpa %s19, 0
    %21 = vsyncpa [#allocation6], 0
    %s22 = scalar_lea.sflag [#allocation6], 1
    %23 = vsyncpa %s22, 0
    %24 = vsyncpa [#allocation9], 0
    %s25 = scalar_lea.sflag [#allocation9], 1
    %26 = vsyncpa %s25, 0
    %27 = vsyncpa [#allocation12], 0
    %28 = vsyncpa [#allocation15], 0
    %29 = vsyncpa [#allocation4], 0
    %s30 = scalar_lea.sflag [#allocation4], 1
    %31 = vsyncpa %s30, 0
    loop: start=0, step=1, limit=4
    $region2: #{tpu_custom_call.1} parent=1 // loop_pre_header
      _
    $region3: #{tpu_custom_call.1} parent=1 // loop_header
      %s33 = sphi 0, %s37
      %p34 = scmp.ge.s32.totalorder %s33, 4
      %s40 = sphi 0, %s52
      %s41 = sphi 0, %s48
      %s42 = sphi 0, %s40
      %s43 = sphi 0, %s41
      %s44 = sphi 0, %s42
      %s45 = sphi 0, %s43
      %s57 = sphi 0, %s59
      %s60 = sphi 0, %s57
      %s61 = sphi 0, %s60
      %s77 = sphi 0, %s61
      %s85 = sphi 0, %s87
      %s88 = sphi 0, %s85
      %s89 = sphi 0, %s88
      %s105 = sphi 0, %s89
      %s111 = sphi 0, %s113
      %s114 = sphi 0, %s111
      %s115 = sphi 0, %s114
      %s131 = sphi 0, %s115
      %s137 = sphi 0, %s139
      %s140 = sphi 0, %s137
      %s141 = sphi 0, %s140
      %s157 = sphi 0, %s141
      %s163 = sphi 0, %s165
      %s166 = sphi 0, %s163
      %s167 = sphi 0, %s166
      %s183 = sphi 0, %s167
      %s187 = sphi 0, %s187
      %s189 = sphi 0, %s187
      %s190 = sphi 0, %s189
      %s204 = sphi 0, %s190
      %s208 = sphi 0, %s208
      %s210 = sphi 0, %s208
      %s211 = sphi 0, %s210
      %s225 = sphi 0, %s211
      %s229 = sphi 0, %s229
      %s231 = sphi 0, %s229
      %s232 = sphi 0, %s231
      %s246 = sphi 0, %s232
      %s250 = sphi 0, %s250
      %s252 = sphi 0, %s250
      %s253 = sphi 0, %s252
      %s267 = sphi 0, %s253
      %s271 = sphi 0, %s271
      %s273 = sphi 0, %s271
      %s274 = sphi 0, %s273
      %s288 = sphi 0, %s274
      %s292 = sphi 0, %s292
      %s294 = sphi 0, %s292
      %s295 = sphi 0, %s294
      %s309 = sphi 0, %s295
      %s313 = sphi 0, %s313
      %s315 = sphi 0, %s313
      %s316 = sphi 0, %s315
      %s330 = sphi 0, %s316
      %s334 = sphi 0, %s334
      %s336 = sphi 0, %s334
      %s337 = sphi 0, %s336
      %s351 = sphi 0, %s337
      %s359 = sphi 0, %s361
      %s362 = sphi 0, %s359
      %s363 = sphi 0, %s362
      %s379 = sphi 0, %s363
    $region4: #{tpu_custom_call.1} parent=1 // loop_header_branch
      %36 = sbr.rel (%p34) target = $region8
    $region5: #{tpu_custom_call.1} parent=1 // loop_body
      %s38 = ssub.s32 %s33, 1
      %s39 = ssub.s32 %s33, 2
      %s46 = sadd.s32 1, %s41
      %p47 = scmp.ge.s32.totalorder %s46, 1
      %s48 = scalar_select %p47, 0, %s46
      %s49 = sadd.s32 1, %s40
      %s50 = scalar_select %p47, %s49, %s40
      %p51 = scmp.ge.s32.totalorder %s50, 2
      %s52 = scalar_select %p51, 0, %s50
      %s53 = ssub.s32 %s40, %s52
      %s54 = ssub.s32 %s41, %s48
      %s55 = sor.u32 %s53, %s54
      %p56 = scmp.eq.s32.totalorder %s55, 0
      %s58 = sadd.s32 %s57, 1
      %s59 = scalar_select %p56, %s57, %s58
      %p62 = pneg %p56
      %p63 = scmp.eq.s32.totalorder %s33, 1
      %p64 = por %p62, %p63
      %p65 = scmp.ne.s32.totalorder %s57, %s60
      %p66 = scmp.eq.s32.totalorder %s33, 0
      %p67 = por %p65, %p66
      %p68 = scmp.ne.s32.totalorder %s57, %s60
      %p69 = scmp.eq.s32.totalorder %s38, 1
      %p70 = por %p68, %p69
      %p71 = scmp.ne.s32.totalorder %s60, %s61
      %p72 = scmp.eq.s32.totalorder %s38, 0
      %p73 = por %p71, %p72
      %p74 = scmp.ne.s32.totalorder %s60, %s61
      %p75 = scmp.eq.s32.totalorder %s39, 1
      %p76 = por %p74, %p75
      %p78 = scmp.ne.s32.totalorder %s61, %s77
      %p79 = scmp.eq.s32.totalorder %s39, 0
      %p80 = por %p78, %p79
      %s81 = ssub.s32 %s40, %s52
      %s82 = ssub.s32 %s41, %s48
      %s83 = sor.u32 %s81, %s82
      %p84 = scmp.eq.s32.totalorder %s83, 0
      %s86 = sadd.s32 %s85, 1
      %s87 = scalar_select %p84, %s85, %s86
      %p90 = pneg %p84
      %p91 = scmp.eq.s32.totalorder %s33, 1
      %p92 = por %p90, %p91
      %p93 = scmp.ne.s32.totalorder %s85, %s88
      %p94 = scmp.eq.s32.totalorder %s33, 0
      %p95 = por %p93, %p94
      %p96 = scmp.ne.s32.totalorder %s85, %s88
      %p97 = scmp.eq.s32.totalorder %s38, 1
      %p98 = por %p96, %p97
      %p99 = scmp.ne.s32.totalorder %s88, %s89
      %p100 = scmp.eq.s32.totalorder %s38, 0
      %p101 = por %p99, %p100
      %p102 = scmp.ne.s32.totalorder %s88, %s89
      %p103 = scmp.eq.s32.totalorder %s39, 1
      %p104 = por %p102, %p103
      %p106 = scmp.ne.s32.totalorder %s89, %s105
      %p107 = scmp.eq.s32.totalorder %s39, 0
      %p108 = por %p106, %p107
      %s109 = ssub.s32 %s40, %s52
      %p110 = scmp.eq.s32.totalorder %s109, 0
      %s112 = sadd.s32 %s111, 1
      %s113 = scalar_select %p110, %s111, %s112
      %p116 = pneg %p110
      %p117 = scmp.eq.s32.totalorder %s33, 1
      %p118 = por %p116, %p117
      %p119 = scmp.ne.s32.totalorder %s111, %s114
      %p120 = scmp.eq.s32.totalorder %s33, 0
      %p121 = por %p119, %p120
      %p122 = scmp.ne.s32.totalorder %s111, %s114
      %p123 = scmp.eq.s32.totalorder %s38, 1
      %p124 = por %p122, %p123
      %p125 = scmp.ne.s32.totalorder %s114, %s115
      %p126 = scmp.eq.s32.totalorder %s38, 0
      %p127 = por %p125, %p126
      %p128 = scmp.ne.s32.totalorder %s114, %s115
      %p129 = scmp.eq.s32.totalorder %s39, 1
      %p130 = por %p128, %p129
      %p132 = scmp.ne.s32.totalorder %s115, %s131
      %p133 = scmp.eq.s32.totalorder %s39, 0
      %p134 = por %p132, %p133
      %s135 = ssub.s32 %s40, %s52
      %p136 = scmp.eq.s32.totalorder %s135, 0
      %s138 = sadd.s32 %s137, 1
      %s139 = scalar_select %p136, %s137, %s138
      %p142 = pneg %p136
      %p143 = scmp.eq.s32.totalorder %s33, 1
      %p144 = por %p142, %p143
      %p145 = scmp.ne.s32.totalorder %s137, %s140
      %p146 = scmp.eq.s32.totalorder %s33, 0
      %p147 = por %p145, %p146
      %p148 = scmp.ne.s32.totalorder %s137, %s140
      %p149 = scmp.eq.s32.totalorder %s38, 1
      %p150 = por %p148, %p149
      %p151 = scmp.ne.s32.totalorder %s140, %s141
      %p152 = scmp.eq.s32.totalorder %s38, 0
      %p153 = por %p151, %p152
      %p154 = scmp.ne.s32.totalorder %s140, %s141
      %p155 = scmp.eq.s32.totalorder %s39, 1
      %p156 = por %p154, %p155
      %p158 = scmp.ne.s32.totalorder %s141, %s157
      %p159 = scmp.eq.s32.totalorder %s39, 0
      %p160 = por %p158, %p159
      %s161 = ssub.s32 %s40, %s52
      %p162 = scmp.eq.s32.totalorder %s161, 0
      %s164 = sadd.s32 %s163, 1
      %s165 = scalar_select %p162, %s163, %s164
      %p168 = pneg %p162
      %p169 = scmp.eq.s32.totalorder %s33, 1
      %p170 = por %p168, %p169
      %p171 = scmp.ne.s32.totalorder %s163, %s166
      %p172 = scmp.eq.s32.totalorder %s33, 0
      %p173 = por %p171, %p172
      %p174 = scmp.ne.s32.totalorder %s163, %s166
      %p175 = scmp.eq.s32.totalorder %s38, 1
      %p176 = por %p174, %p175
      %p177 = scmp.ne.s32.totalorder %s166, %s167
      %p178 = scmp.eq.s32.totalorder %s38, 0
      %p179 = por %p177, %p178
      %p180 = scmp.ne.s32.totalorder %s166, %s167
      %p181 = scmp.eq.s32.totalorder %s39, 1
      %p182 = por %p180, %p181
      %p184 = scmp.ne.s32.totalorder %s167, %s183
      %p185 = scmp.eq.s32.totalorder %s39, 0
      %p186 = por %p184, %p185
      %s188 = sadd.s32 %s187, 1
      %p191 = scmp.eq.s32.totalorder %s33, 1
      %p192 = scmp.ne.s32.totalorder %s187, %s189
      %p193 = scmp.eq.s32.totalorder %s33, 0
      %p194 = por %p192, %p193
      %p195 = scmp.ne.s32.totalorder %s187, %s189
      %p196 = scmp.eq.s32.totalorder %s38, 1
      %p197 = por %p195, %p196
      %p198 = scmp.ne.s32.totalorder %s189, %s190
      %p199 = scmp.eq.s32.totalorder %s38, 0
      %p200 = por %p198, %p199
      %p201 = scmp.ne.s32.totalorder %s189, %s190
      %p202 = scmp.eq.s32.totalorder %s39, 1
      %p203 = por %p201, %p202
      %p205 = scmp.ne.s32.totalorder %s190, %s204
      %p206 = scmp.eq.s32.totalorder %s39, 0
      %p207 = por %p205, %p206
      %s209 = sadd.s32 %s208, 1
      %p212 = scmp.eq.s32.totalorder %s33, 1
      %p213 = scmp.ne.s32.totalorder %s208, %s210
      %p214 = scmp.eq.s32.totalorder %s33, 0
      %p215 = por %p213, %p214
      %p216 = scmp.ne.s32.totalorder %s208, %s210
      %p217 = scmp.eq.s32.totalorder %s38, 1
      %p218 = por %p216, %p217
      %p219 = scmp.ne.s32.totalorder %s210, %s211
      %p220 = scmp.eq.s32.totalorder %s38, 0
      %p221 = por %p219, %p220
      %p222 = scmp.ne.s32.totalorder %s210, %s211
      %p223 = scmp.eq.s32.totalorder %s39, 1
      %p224 = por %p222, %p223
      %p226 = scmp.ne.s32.totalorder %s211, %s225
      %p227 = scmp.eq.s32.totalorder %s39, 0
      %p228 = por %p226, %p227
      %s230 = sadd.s32 %s229, 1
      %p233 = scmp.eq.s32.totalorder %s33, 1
      %p234 = scmp.ne.s32.totalorder %s229, %s231
      %p235 = scmp.eq.s32.totalorder %s33, 0
      %p236 = por %p234, %p235
      %p237 = scmp.ne.s32.totalorder %s229, %s231
      %p238 = scmp.eq.s32.totalorder %s38, 1
      %p239 = por %p237, %p238
      %p240 = scmp.ne.s32.totalorder %s231, %s232
      %p241 = scmp.eq.s32.totalorder %s38, 0
      %p242 = por %p240, %p241
      %p243 = scmp.ne.s32.totalorder %s231, %s232
      %p244 = scmp.eq.s32.totalorder %s39, 1
      %p245 = por %p243, %p244
      %p247 = scmp.ne.s32.totalorder %s232, %s246
      %p248 = scmp.eq.s32.totalorder %s39, 0
      %p249 = por %p247, %p248
      %s251 = sadd.s32 %s250, 1
      %p254 = scmp.eq.s32.totalorder %s33, 1
      %p255 = scmp.ne.s32.totalorder %s250, %s252
      %p256 = scmp.eq.s32.totalorder %s33, 0
      %p257 = por %p255, %p256
      %p258 = scmp.ne.s32.totalorder %s250, %s252
      %p259 = scmp.eq.s32.totalorder %s38, 1
      %p260 = por %p258, %p259
      %p261 = scmp.ne.s32.totalorder %s252, %s253
      %p262 = scmp.eq.s32.totalorder %s38, 0
      %p263 = por %p261, %p262
      %p264 = scmp.ne.s32.totalorder %s252, %s253
      %p265 = scmp.eq.s32.totalorder %s39, 1
      %p266 = por %p264, %p265
      %p268 = scmp.ne.s32.totalorder %s253, %s267
      %p269 = scmp.eq.s32.totalorder %s39, 0
      %p270 = por %p268, %p269
      %s272 = sadd.s32 %s271, 1
      %p275 = scmp.eq.s32.totalorder %s33, 1
      %p276 = scmp.ne.s32.totalorder %s271, %s273
      %p277 = scmp.eq.s32.totalorder %s33, 0
      %p278 = por %p276, %p277
      %p279 = scmp.ne.s32.totalorder %s271, %s273
      %p280 = scmp.eq.s32.totalorder %s38, 1
      %p281 = por %p279, %p280
      %p282 = scmp.ne.s32.totalorder %s273, %s274
      %p283 = scmp.eq.s32.totalorder %s38, 0
      %p284 = por %p282, %p283
      %p285 = scmp.ne.s32.totalorder %s273, %s274
      %p286 = scmp.eq.s32.totalorder %s39, 1
      %p287 = por %p285, %p286
      %p289 = scmp.ne.s32.totalorder %s274, %s288
      %p290 = scmp.eq.s32.totalorder %s39, 0
      %p291 = por %p289, %p290
      %s293 = sadd.s32 %s292, 1
      %p296 = scmp.eq.s32.totalorder %s33, 1
      %p297 = scmp.ne.s32.totalorder %s292, %s294
      %p298 = scmp.eq.s32.totalorder %s33, 0
      %p299 = por %p297, %p298
      %p300 = scmp.ne.s32.totalorder %s292, %s294
      %p301 = scmp.eq.s32.totalorder %s38, 1
      %p302 = por %p300, %p301
      %p303 = scmp.ne.s32.totalorder %s294, %s295
      %p304 = scmp.eq.s32.totalorder %s38, 0
      %p305 = por %p303, %p304
      %p306 = scmp.ne.s32.totalorder %s294, %s295
      %p307 = scmp.eq.s32.totalorder %s39, 1
      %p308 = por %p306, %p307
      %p310 = scmp.ne.s32.totalorder %s295, %s309
      %p311 = scmp.eq.s32.totalorder %s39, 0
      %p312 = por %p310, %p311
      %s314 = sadd.s32 %s313, 1
      %p317 = scmp.eq.s32.totalorder %s33, 1
      %p318 = scmp.ne.s32.totalorder %s313, %s315
      %p319 = scmp.eq.s32.totalorder %s33, 0
      %p320 = por %p318, %p319
      %p321 = scmp.ne.s32.totalorder %s313, %s315
      %p322 = scmp.eq.s32.totalorder %s38, 1
      %p323 = por %p321, %p322
      %p324 = scmp.ne.s32.totalorder %s315, %s316
      %p325 = scmp.eq.s32.totalorder %s38, 0
      %p326 = por %p324, %p325
      %p327 = scmp.ne.s32.totalorder %s315, %s316
      %p328 = scmp.eq.s32.totalorder %s39, 1
      %p329 = por %p327, %p328
      %p331 = scmp.ne.s32.totalorder %s316, %s330
      %p332 = scmp.eq.s32.totalorder %s39, 0
      %p333 = por %p331, %p332
      %s335 = sadd.s32 %s334, 1
      %p338 = scmp.eq.s32.totalorder %s33, 1
      %p339 = scmp.ne.s32.totalorder %s334, %s336
      %p340 = scmp.eq.s32.totalorder %s33, 0
      %p341 = por %p339, %p340
      %p342 = scmp.ne.s32.totalorder %s334, %s336
      %p343 = scmp.eq.s32.totalorder %s38, 1
      %p344 = por %p342, %p343
      %p345 = scmp.ne.s32.totalorder %s336, %s337
      %p346 = scmp.eq.s32.totalorder %s38, 0
      %p347 = por %p345, %p346
      %p348 = scmp.ne.s32.totalorder %s336, %s337
      %p349 = scmp.eq.s32.totalorder %s39, 1
      %p350 = por %p348, %p349
      %p352 = scmp.ne.s32.totalorder %s337, %s351
      %p353 = scmp.eq.s32.totalorder %s39, 0
      %p354 = por %p352, %p353
      %s355 = ssub.s32 %s40, %s52
      %s356 = ssub.s32 %s41, %s48
      %s357 = sor.u32 %s355, %s356
      %p358 = scmp.eq.s32.totalorder %s357, 0
      %s360 = sadd.s32 %s359, 1
      %s361 = scalar_select %p358, %s359, %s360
      %p364 = pneg %p358
      %p365 = scmp.eq.s32.totalorder %s33, 1
      %p366 = por %p364, %p365
      %p367 = scmp.ne.s32.totalorder %s359, %s362
      %p368 = scmp.eq.s32.totalorder %s33, 0
      %p369 = por %p367, %p368
      %p370 = scmp.ne.s32.totalorder %s359, %s362
      %p371 = scmp.eq.s32.totalorder %s38, 1
      %p372 = por %p370, %p371
      %p373 = scmp.ne.s32.totalorder %s362, %s363
      %p374 = scmp.eq.s32.totalorder %s38, 0
      %p375 = por %p373, %p374
      %p376 = scmp.ne.s32.totalorder %s362, %s363
      %p377 = scmp.eq.s32.totalorder %s39, 1
      %p378 = por %p376, %p377
      %p380 = scmp.ne.s32.totalorder %s363, %s379
      %p381 = scmp.eq.s32.totalorder %s39, 0
      %p382 = por %p380, %p381
      %p383 = scmp.le.s32.totalorder 1, %s33
      %p384 = scmp.lt.s32.totalorder %s33, 3
      %p385 = pnand %p383, %p384
      %p386 = pneg %p385
      // Predicated region
      $region9: #{tpu_custom_call.1} parent=5 // pred_check
        _
      $region10: #{tpu_custom_call.1} parent=5 // pred_check_branch
        %388 = sbr.rel (%p385) target = $region12
      $region11: #{tpu_custom_call.1} parent=5 // pred_region
        %s389 = ssub.s32 %s33, 1
        // Predicated region
        $region13: #{tpu_custom_call.1} parent=11 // pred_check
          %p390 = pneg %p200
        $region14: #{tpu_custom_call.1} parent=11 // pred_check_branch
          %392 = sbr.rel (%p390) target = $region16
        $region15: #{tpu_custom_call.1} parent=11 // pred_region
          %s394 = ssub.s32 256, 256
          %395 = vsyncadd [#allocation9], %s394
          %s396 = sshll.u32 [#allocation10], 4
          %s397 = int_to_ptr.vmem [resolvable:$true] %s396
          %402 = dma.hbm_to_vmem [thread:$0]  %s5, 256, %s397, [#allocation9], 64, 64, 4
        $region16: #{tpu_custom_call.1} parent=11 // pred_fallthru
          _
        // Predicated region
        $region17: #{tpu_custom_call.1} parent=11 // pred_check
          %p403 = pneg %p221
        $region18: #{tpu_custom_call.1} parent=11 // pred_check_branch
          %405 = sbr.rel (%p403) target = $region20
        $region19: #{tpu_custom_call.1} parent=11 // pred_region
          %s407 = ssub.s32 256, 256
          %408 = vsyncadd [#allocation12], %s407
          %s409 = sshll.u32 [#allocation11], 4
          %s410 = int_to_ptr.vmem [resolvable:$true] %s409
          %415 = dma.hbm_to_vmem [thread:$0]  %s6, 256, %s410, [#allocation12], 64, 64, 4
        $region20: #{tpu_custom_call.1} parent=11 // pred_fallthru
          _
        // Predicated region
        $region21: #{tpu_custom_call.1} parent=11 // pred_check
          %p416 = pneg %p242
        $region22: #{tpu_custom_call.1} parent=11 // pred_check_branch
          %418 = sbr.rel (%p416) target = $region24
        $region23: #{tpu_custom_call.1} parent=11 // pred_region
          %s420 = ssub.s32 256, 256
          %421 = vsyncadd [#allocation12], %s420
          %s422 = sshll.u32 [#allocation13], 4
          %s423 = int_to_ptr.vmem [resolvable:$true] %s422
          %428 = dma.hbm_to_vmem [thread:$0]  %s7, 256, %s423, [#allocation12], 64, 64, 4
        $region24: #{tpu_custom_call.1} parent=11 // pred_fallthru
          _
        // Predicated region
        $region25: #{tpu_custom_call.1} parent=11 // pred_check
          %p429 = pneg %p263
        $region26: #{tpu_custom_call.1} parent=11 // pred_check_branch
          %431 = sbr.rel (%p429) target = $region28
        $region27: #{tpu_custom_call.1} parent=11 // pred_region
          %s433 = ssub.s32 256, 256
          %434 = vsyncadd [#allocation15], %s433
          %s435 = sshll.u32 [#allocation14], 4
          %s436 = int_to_ptr.vmem [resolvable:$true] %s435
          %441 = dma.hbm_to_vmem [thread:$0]  %s8, 256, %s436, [#allocation15], 64, 64, 4
        $region28: #{tpu_custom_call.1} parent=11 // pred_fallthru
          _
        // Predicated region
        $region29: #{tpu_custom_call.1} parent=11 // pred_check
          %p442 = pneg %p284
        $region30: #{tpu_custom_call.1} parent=11 // pred_check_branch
          %444 = sbr.rel (%p442) target = $region32
        $region31: #{tpu_custom_call.1} parent=11 // pred_region
          _
        $region32: #{tpu_custom_call.1} parent=11 // pred_fallthru
          _
        // Predicated region
        $region33: #{tpu_custom_call.1} parent=11 // pred_check
          %p445 = pneg %p305
        $region34: #{tpu_custom_call.1} parent=11 // pred_check_branch
          %447 = sbr.rel (%p445) target = $region36
        $region35: #{tpu_custom_call.1} parent=11 // pred_region
          _
        $region36: #{tpu_custom_call.1} parent=11 // pred_fallthru
          _
        // Predicated region
        $region37: #{tpu_custom_call.1} parent=11 // pred_check
          %p448 = pneg %p326
        $region38: #{tpu_custom_call.1} parent=11 // pred_check_branch
          %450 = sbr.rel (%p448) target = $region40
        $region39: #{tpu_custom_call.1} parent=11 // pred_region
          _
        $region40: #{tpu_custom_call.1} parent=11 // pred_fallthru
          _
        // Predicated region
        $region41: #{tpu_custom_call.1} parent=11 // pred_check
          %p451 = pneg %p347
        $region42: #{tpu_custom_call.1} parent=11 // pred_check_branch
          %453 = sbr.rel (%p451) target = $region44
        $region43: #{tpu_custom_call.1} parent=11 // pred_region
          _
        $region44: #{tpu_custom_call.1} parent=11 // pred_fallthru
          _
      $region12: #{tpu_custom_call.1} parent=5 // pred_fallthru
        _
      %p454 = scmp.lt.s32.totalorder %s33, 2
      // Predicated region
      $region45: #{tpu_custom_call.1} parent=5 // pred_check
        %p455 = pneg %p454
      $region46: #{tpu_custom_call.1} parent=5 // pred_check_branch
        %457 = sbr.rel (%p455) target = $region48
      $region47: #{tpu_custom_call.1} parent=5 // pred_region
        // Predicated region
        $region49: #{tpu_custom_call.1} parent=47 // pred_check
          %p458 = pneg %p67
        $region50: #{tpu_custom_call.1} parent=47 // pred_check_branch
          %460 = sbr.rel (%p458) target = $region52
        $region51: #{tpu_custom_call.1} parent=47 // pred_region
          %s461 = sand.u32 %s57, 1
          %s462 = scalar_lea.sflag [#allocation3], %s461
          %s463 = sand.u32 %s57, 1
          %s464 = smul.addr %s463, 8
          %s465 = scalar_lea.vmem [#allocation2], %s464
          %s467 = ssub.s32 128, 128
          %468 = vsyncadd %s462, %s467
          %s469 = sadd.s32 %s41, %s40
          %s470 = smul.addr %s469, 128
          %s471 = scalar_lea.hbm %s0, %s470
          %s473 = sshll.u32 %s465, 4
          %s474 = int_to_ptr.vmem [resolvable:$true] %s473
          %476 = dma.hbm_to_vmem [thread:$0]  %s471, 128, %s474, %s462
        $region52: #{tpu_custom_call.1} parent=47 // pred_fallthru
          _
        // Predicated region
        $region53: #{tpu_custom_call.1} parent=47 // pred_check
          %p477 = pneg %p95
        $region54: #{tpu_custom_call.1} parent=47 // pred_check_branch
          %479 = sbr.rel (%p477) target = $region56
        $region55: #{tpu_custom_call.1} parent=47 // pred_region
          %s480 = sand.u32 %s33, 1
          %s481 = scalar_lea.sflag [#allocation6], %s480
          %s482 = sand.u32 %s85, 1
          %s483 = smul.addr %s482, 8
          %s484 = scalar_lea.vmem [#allocation5], %s483
          %s486 = ssub.s32 128, 128
          %487 = vsyncadd %s481, %s486
          %s488 = sadd.s32 %s41, %s40
          %s489 = smul.addr %s488, 128
          %s490 = scalar_lea.hbm %s1, %s489
          %s492 = sshll.u32 %s484, 4
          %s493 = int_to_ptr.vmem [resolvable:$true] %s492
          %495 = dma.hbm_to_vmem [thread:$0]  %s490, 128, %s493, %s481
        $region56: #{tpu_custom_call.1} parent=47 // pred_fallthru
          _
        // Predicated region
        $region57: #{tpu_custom_call.1} parent=47 // pred_check
          %p496 = pneg %p121
        $region58: #{tpu_custom_call.1} parent=47 // pred_check_branch
          %498 = sbr.rel (%p496) target = $region60
        $region59: #{tpu_custom_call.1} parent=47 // pred_region
          %s499 = sand.u32 %s33, 1
          %s500 = scalar_lea.sflag [#allocation6], %s499
          %s501 = sand.u32 %s111, 1
          %s502 = smul.addr %s501, 16
          %s503 = scalar_lea.vmem [#allocation7], %s502
          %s505 = ssub.s32 256, 256
          %506 = vsyncadd %s500, %s505
          %s507 = smul.addr %s40, 2
          %s508 = smul.addr %s507, 128
          %s509 = scalar_lea.hbm %s2, %s508
          %s510 = sshll.u32 %s503, 4
          %s511 = int_to_ptr.vmem [resolvable:$true] %s510
          %516 = dma.hbm_to_vmem [thread:$0]  %s509, 256, %s511, %s500, 128, 128, 8
        $region60: #{tpu_custom_call.1} parent=47 // pred_fallthru
          _
        // Predicated region
        $region61: #{tpu_custom_call.1} parent=47 // pred_check
          %p517 = pneg %p147
        $region62: #{tpu_custom_call.1} parent=47 // pred_check_branch
          %519 = sbr.rel (%p517) target = $region64
        $region63: #{tpu_custom_call.1} parent=47 // pred_region
          %s520 = sand.u32 %s33, 1
          %s521 = scalar_lea.sflag [#allocation9], %s520
          %s522 = sand.u32 %s137, 1
          %s523 = smul.addr %s522, 16
          %s524 = scalar_lea.vmem [#allocation8], %s523
          %s526 = ssub.s32 256, 256
          %527 = vsyncadd %s521, %s526
          %s528 = smul.addr %s40, 2
          %s529 = smul.addr %s528, 128
          %s530 = scalar_lea.hbm %s3, %s529
          %s531 = sshll.u32 %s524, 4
          %s532 = int_to_ptr.vmem [resolvable:$true] %s531
          %537 = dma.hbm_to_vmem [thread:$0]  %s530, 256, %s532, %s521, 128, 128, 8
        $region64: #{tpu_custom_call.1} parent=47 // pred_fallthru
          _
        // Predicated region
        $region65: #{tpu_custom_call.1} parent=47 // pred_check
          %p538 = pneg %p173
        $region66: #{tpu_custom_call.1} parent=47 // pred_check_branch
          %540 = sbr.rel (%p538) target = $region68
        $region67: #{tpu_custom_call.1} parent=47 // pred_region
          %p541 = scmp.lt.s32.totalorder %s40, 1
          %s542 = scalar_select %p541, %s40, 1
          %s543 = scalar_lea.vmem %s4, %s542
        $region68: #{tpu_custom_call.1} parent=47 // pred_fallthru
          _
      $region48: #{tpu_custom_call.1} parent=5 // pred_fallthru
        _
      %p544 = scmp.le.s32.totalorder 1, %s33
      %p545 = scmp.lt.s32.totalorder %s33, 3
      %p546 = pnand %p544, %p545
      %p547 = pneg %p546
      // Predicated region
      $region69: #{tpu_custom_call.1} parent=5 // pred_check
        _
      $region70: #{tpu_custom_call.1} parent=5 // pred_check_branch
        %549 = sbr.rel (%p546) target = $region72
      $region71: #{tpu_custom_call.1} parent=5 // pred_region
        %s550 = ssub.s32 %s33, 1
        %s551 = sand.u32 %s60, 1
        %s552 = scalar_lea.sflag [#allocation3], %s551
        %s553 = sand.u32 %s60, 1
        %s554 = smul.addr %s553, 8
        %s555 = scalar_lea.vmem [#allocation2], %s554
        // Predicated region
        $region73: #{tpu_custom_call.1} parent=71 // pred_check
          %p556 = pneg %p73
        $region74: #{tpu_custom_call.1} parent=71 // pred_check_branch
          %558 = sbr.rel (%p556) target = $region76
        $region75: #{tpu_custom_call.1} parent=71 // pred_region
          %559 = dma.done %s552, 128
        $region76: #{tpu_custom_call.1} parent=71 // pred_fallthru
          _
        %s560 = sand.u32 %s38, 1
        %s561 = scalar_lea.sflag [#allocation6], %s560
        %s562 = sand.u32 %s88, 1
        %s563 = smul.addr %s562, 8
        %s564 = scalar_lea.vmem [#allocation5], %s563
        // Predicated region
        $region77: #{tpu_custom_call.1} parent=71 // pred_check
          %p565 = pneg %p101
        $region78: #{tpu_custom_call.1} parent=71 // pred_check_branch
          %567 = sbr.rel (%p565) target = $region80
        $region79: #{tpu_custom_call.1} parent=71 // pred_region
          %568 = dma.done %s561, 128
        $region80: #{tpu_custom_call.1} parent=71 // pred_fallthru
          _
        %s569 = sand.u32 %s38, 1
        %s570 = scalar_lea.sflag [#allocation6], %s569
        %s571 = sand.u32 %s114, 1
        %s572 = smul.addr %s571, 16
        %s573 = scalar_lea.vmem [#allocation7], %s572
        // Predicated region
        $region81: #{tpu_custom_call.1} parent=71 // pred_check
          %p574 = pneg %p127
        $region82: #{tpu_custom_call.1} parent=71 // pred_check_branch
          %576 = sbr.rel (%p574) target = $region84
        $region83: #{tpu_custom_call.1} parent=71 // pred_region
          %577 = dma.done %s570, 256
        $region84: #{tpu_custom_call.1} parent=71 // pred_fallthru
          _
        %s578 = sand.u32 %s38, 1
        %s579 = scalar_lea.sflag [#allocation9], %s578
        %s580 = sand.u32 %s140, 1
        %s581 = smul.addr %s580, 16
        %s582 = scalar_lea.vmem [#allocation8], %s581
        // Predicated region
        $region85: #{tpu_custom_call.1} parent=71 // pred_check
          %p583 = pneg %p153
        $region86: #{tpu_custom_call.1} parent=71 // pred_check_branch
          %585 = sbr.rel (%p583) target = $region88
        $region87: #{tpu_custom_call.1} parent=71 // pred_region
          %586 = dma.done %s579, 256
        $region88: #{tpu_custom_call.1} parent=71 // pred_fallthru
          _
        // Predicated region
        $region89: #{tpu_custom_call.1} parent=71 // pred_check
          %p587 = pneg %p200
        $region90: #{tpu_custom_call.1} parent=71 // pred_check_branch
          %589 = sbr.rel (%p587) target = $region92
        $region91: #{tpu_custom_call.1} parent=71 // pred_region
          %590 = dma.done [#allocation9], 256
        $region92: #{tpu_custom_call.1} parent=71 // pred_fallthru
          _
        // Predicated region
        $region93: #{tpu_custom_call.1} parent=71 // pred_check
          %p591 = pneg %p221
        $region94: #{tpu_custom_call.1} parent=71 // pred_check_branch
          %593 = sbr.rel (%p591) target = $region96
        $region95: #{tpu_custom_call.1} parent=71 // pred_region
          %594 = dma.done [#allocation12], 256
        $region96: #{tpu_custom_call.1} parent=71 // pred_fallthru
          _
        // Predicated region
        $region97: #{tpu_custom_call.1} parent=71 // pred_check
          %p595 = pneg %p242
        $region98: #{tpu_custom_call.1} parent=71 // pred_check_branch
          %597 = sbr.rel (%p595) target = $region100
        $region99: #{tpu_custom_call.1} parent=71 // pred_region
          %598 = dma.done [#allocation12], 256
        $region100: #{tpu_custom_call.1} parent=71 // pred_fallthru
          _
        // Predicated region
        $region101: #{tpu_custom_call.1} parent=71 // pred_check
          %p599 = pneg %p263
        $region102: #{tpu_custom_call.1} parent=71 // pred_check_branch
          %601 = sbr.rel (%p599) target = $region104
        $region103: #{tpu_custom_call.1} parent=71 // pred_region
          %602 = dma.done [#allocation15], 256
        $region104: #{tpu_custom_call.1} parent=71 // pred_fallthru
          _
        %s603 = sand.u32 %s60, 1
        %s604 = scalar_lea.sflag [#allocation3], %s603
        %s605 = sand.u32 %s60, 1
        %s606 = smul.addr %s605, 8
        %s607 = scalar_lea.vmem [#allocation2], %s606
        %p608 = pneg %p73
        %p609 = pneg %p70
        %s610 = sand.u32 %s38, 1
        %s611 = scalar_lea.sflag [#allocation6], %s610
        %s612 = sand.u32 %s88, 1
        %s613 = smul.addr %s612, 8
        %s614 = scalar_lea.vmem [#allocation5], %s613
        %p615 = pneg %p101
        %p616 = pneg %p98
        %s617 = sand.u32 %s38, 1
        %s618 = scalar_lea.sflag [#allocation6], %s617
        %s619 = sand.u32 %s114, 1
        %s620 = smul.addr %s619, 16
        %s621 = scalar_lea.vmem [#allocation7], %s620
        %p622 = pneg %p127
        %p623 = pneg %p124
        %s624 = sand.u32 %s38, 1
        %s625 = scalar_lea.sflag [#allocation9], %s624
        %s626 = sand.u32 %s140, 1
        %s627 = smul.addr %s626, 16
        %s628 = scalar_lea.vmem [#allocation8], %s627
        %p629 = pneg %p153
        %p630 = pneg %p150
        %p631 = scmp.lt.s32.totalorder %s42, 1
        %s632 = scalar_select %p631, %s42, 1
        %s633 = scalar_lea.vmem %s4, %s632
        %p634 = pneg %p179
        %p635 = pneg %p176
        %p636 = pneg %p200
        %p637 = pneg %p197
        %p638 = pneg %p221
        %p639 = pneg %p218
        %p640 = pneg %p242
        %p641 = pneg %p239
        %p642 = pneg %p263
        %p643 = pneg %p260
        %p644 = pneg %p284
        %p645 = pneg %p281
        %p646 = pneg %p305
        %p647 = pneg %p302
        %p648 = pneg %p326
        %p649 = pneg %p323
        %p650 = pneg %p347
        %p651 = pneg %p344
        %p652 = pneg %p375
        %p653 = pneg %p372
        %s654 = sand.u32 %s362, 1
        %s655 = scalar_lea.sflag [#allocation4], %s654
        %s656 = sand.u32 %s362, 1
        %s657 = smul.addr %s656, 8
        %s658 = scalar_lea.vmem [#allocation16], %s657
        %p659 = scmp.lt.s32.totalorder %s42, 1
        %s660 = scalar_select %p659, %s42, 1
        %s661 = scalar_lea.vmem %s4, %s660
        %v663 = vld [vmem:[%s555] sm:$0xff]
        %v664 = vld [vmem:[%s564] sm:$0xff]
        %v665 = vadd.f32 %v663, %v664
        %v666 = vpack.c.bf16 %v665, %v665
        %v667 = vld [vmem:[%s573] sm:$0xff]
        %v668 = vld [vmem:[%s573 + $0x8] sm:$0xff]
        %v669 = vld [vmem:[%s582] sm:$0xff]
        %v670 = vld [vmem:[%s582 + $0x8] sm:$0xff]
        %v671 = vadd.f32 %v667, %v669
        %v672 = vadd.f32 %v668, %v670
        %v673 = vpack.c.bf16 %v672, %v671
        %v674 = vpack.c.bf16 %v668, %v667
        %v675 = vld [vmem:[#allocation10] sm:$0xf]
        %v676 = vld [vmem:[#allocation10 + $0x4] sm:$0xf]
        %v677 = vld [vmem:[#allocation10 + $0x8] sm:$0xf]
        %v678 = vld [vmem:[#allocation10 + $0xc] sm:$0xf]
        %v679 = vld [vmem:[%s9] sm:$0x1]
        %v681 = vlaneseq
        %v682 = vshrl.u32 %v681, 7
        %v683 = vsub.s32 0, %v682
        %v684 = vrot.slane %v679, %v683
        %v690 = vunpack.c.l.b16 %v675
        %v691 = vunpack.c.l.b16 %v676
        %v692 = vunpack.c.l.b16 %v677
        %v693 = vunpack.c.l.b16 %v678
        %v694 = vpack.c.b16 %v691, %v690
        %v695 = vpack.c.b16 %v693, %v692
        %vm698 = vcmask 261120
        %v700 = vsel %vm698, %v666, 0
        %702 = vmatprep.subr.bf16.mxu0 0
        %703 = vmatpush1.bf16.msra.mxu0 0
        %704 = vmatprep.subr.bf16.mxu0 0
        %705 = vmatpush1.bf16.msra.mxu0 0
        %706 = vmatprep.subr.bf16.mxu0 0
        %707 = vmatpush1.bf16.msra.mxu0 0
        %708 = vmatprep.subr.bf16.mxu0 0
        %709 = vmatpush1.bf16.msra.mxu0 0
        %710 = vmatprep.subr.bf16.mxu0 0
        %711 = vmatpush1.bf16.msra.mxu0 0
        %712 = vmatprep.subr.bf16.mxu0 0
        %713 = vmatpush1.bf16.msra.mxu0 0
        %714 = vmatprep.subr.bf16.mxu0 0
        %715 = vmatpush1.bf16.msra.mxu0 %v695
        %716 = vmatprep.subr.bf16.mxu0 0
        %717 = vmatpush1.bf16.msra.mxu0 %v694
        %718 = vmatprep.subr.bf16.mxu0 0
        %719 = vmatpush2.bf16.msra.mxu0 0
        %720 = vmatprep.subr.bf16.mxu0 0
        %721 = vmatpush2.bf16.msra.mxu0 0
        %722 = vmatprep.subr.bf16.mxu0 0
        %723 = vmatpush2.bf16.msra.mxu0 0
        %724 = vmatprep.subr.bf16.mxu0 0
        %725 = vmatpush2.bf16.msra.mxu0 0
        %726 = vmatprep.subr.bf16.mxu0 0
        %727 = vmatpush2.bf16.msra.mxu0 0
        %728 = vmatprep.subr.bf16.mxu0 0
        %729 = vmatpush2.bf16.msra.mxu0 0
        %730 = vmatprep.subr.bf16.mxu0 0
        %731 = vmatpush2.bf16.msra.mxu0 0
        %732 = vmatprep.subr.bf16.mxu0 0
        %733 = vmatpush2.bf16.msra.mxu0 0
        %734 = vmatprep.mubr.bf16.mxu0 0
        %735 = vmatmul.mubr.bf16.gmra.mxu0 %v700
        %v736 = vpop.f32.mrf.mxu0
        %v737 = vadd.f32 %v684, %v736
        %v738 = vpop.f32.mrf.mxu0
        %v739 = vpop.f32.mrf.mxu0
        %v740 = vpop.f32.mrf.mxu0
        %741 = vdwg.mxu0
        %v742 = vld [vmem:[#allocation11] sm:$0xf]
        %v743 = vld [vmem:[#allocation11 + $0x4] sm:$0xf]
        %v744 = vld [vmem:[#allocation11 + $0x8] sm:$0xf]
        %v745 = vld [vmem:[#allocation11 + $0xc] sm:$0xf]
        %v746 = vld [vmem:[%s10] sm:$0x1]
        %v748 = vlaneseq
        %v749 = vshrl.u32 %v748, 7
        %v750 = vsub.s32 0, %v749
        %v751 = vrot.slane %v746, %v750
        %v757 = vunpack.c.l.b16 %v742
        %v758 = vunpack.c.l.b16 %v743
        %v759 = vunpack.c.l.b16 %v744
        %v760 = vunpack.c.l.b16 %v745
        %v761 = vpack.c.b16 %v758, %v757
        %v762 = vpack.c.b16 %v760, %v759
        %v766 = vsel %vm698, %v673, 0
        %768 = vmatprep.subr.bf16.mxu0 0
        %769 = vmatpush1.bf16.msra.mxu0 0
        %770 = vmatprep.subr.bf16.mxu0 0
        %771 = vmatpush1.bf16.msra.mxu0 0
        %772 = vmatprep.subr.bf16.mxu0 0
        %773 = vmatpush1.bf16.msra.mxu0 0
        %774 = vmatprep.subr.bf16.mxu0 0
        %775 = vmatpush1.bf16.msra.mxu0 0
        %776 = vmatprep.subr.bf16.mxu0 0
        %777 = vmatpush1.bf16.msra.mxu0 0
        %778 = vmatprep.subr.bf16.mxu0 0
        %779 = vmatpush1.bf16.msra.mxu0 0
        %780 = vmatprep.subr.bf16.mxu0 0
        %781 = vmatpush1.bf16.msra.mxu0 %v762
        %782 = vmatprep.subr.bf16.mxu0 0
        %783 = vmatpush1.bf16.msra.mxu0 %v761
        %784 = vmatprep.subr.bf16.mxu0 0
        %785 = vmatpush2.bf16.msra.mxu0 0
        %786 = vmatprep.subr.bf16.mxu0 0
        %787 = vmatpush2.bf16.msra.mxu0 0
        %788 = vmatprep.subr.bf16.mxu0 0
        %789 = vmatpush2.bf16.msra.mxu0 0
        %790 = vmatprep.subr.bf16.mxu0 0
        %791 = vmatpush2.bf16.msra.mxu0 0
        %792 = vmatprep.subr.bf16.mxu0 0
        %793 = vmatpush2.bf16.msra.mxu0 0
        %794 = vmatprep.subr.bf16.mxu0 0
        %795 = vmatpush2.bf16.msra.mxu0 0
        %796 = vmatprep.subr.bf16.mxu0 0
        %797 = vmatpush2.bf16.msra.mxu0 0
        %798 = vmatprep.subr.bf16.mxu0 0
        %799 = vmatpush2.bf16.msra.mxu0 0
        %800 = vmatprep.mubr.bf16.mxu0 0
        %801 = vmatmul.mubr.bf16.gmra.mxu0 %v766
        %v802 = vpop.f32.mrf.mxu0
        %v803 = vadd.f32 %v751, %v802
        %v804 = vpop.f32.mrf.mxu0
        %v805 = vpop.f32.mrf.mxu0
        %v806 = vadd.f32 %v751, %v805
        %v807 = vpop.f32.mrf.mxu0
        %808 = vdwg.mxu0
        %v809 = vld [vmem:[#allocation13] sm:$0xf]
        %v810 = vld [vmem:[#allocation13 + $0x4] sm:$0xf]
        %v811 = vld [vmem:[#allocation13 + $0x8] sm:$0xf]
        %v812 = vld [vmem:[#allocation13 + $0xc] sm:$0xf]
        %v813 = vld [vmem:[%s11] sm:$0x1]
        %v815 = vlaneseq
        %v816 = vshrl.u32 %v815, 7
        %v817 = vsub.s32 0, %v816
        %v818 = vrot.slane %v813, %v817
        %v824 = vunpack.c.l.b16 %v809
        %v825 = vunpack.c.l.b16 %v810
        %v826 = vunpack.c.l.b16 %v811
        %v827 = vunpack.c.l.b16 %v812
        %v828 = vpack.c.b16 %v825, %v824
        %v829 = vpack.c.b16 %v827, %v826
        %v833 = vsel %vm698, %v674, 0
        %835 = vmatprep.subr.bf16.mxu0 0
        %836 = vmatpush1.bf16.msra.mxu0 0
        %837 = vmatprep.subr.bf16.mxu0 0
        %838 = vmatpush1.bf16.msra.mxu0 0
        %839 = vmatprep.subr.bf16.mxu0 0
        %840 = vmatpush1.bf16.msra.mxu0 0
        %841 = vmatprep.subr.bf16.mxu0 0
        %842 = vmatpush1.bf16.msra.mxu0 0
        %843 = vmatprep.subr.bf16.mxu0 0
        %844 = vmatpush1.bf16.msra.mxu0 0
        %845 = vmatprep.subr.bf16.mxu0 0
        %846 = vmatpush1.bf16.msra.mxu0 0
        %847 = vmatprep.subr.bf16.mxu0 0
        %848 = vmatpush1.bf16.msra.mxu0 %v829
        %849 = vmatprep.subr.bf16.mxu0 0
        %850 = vmatpush1.bf16.msra.mxu0 %v828
        %851 = vmatprep.subr.bf16.mxu0 0
        %852 = vmatpush2.bf16.msra.mxu0 0
        %853 = vmatprep.subr.bf16.mxu0 0
        %854 = vmatpush2.bf16.msra.mxu0 0
        %855 = vmatprep.subr.bf16.mxu0 0
        %856 = vmatpush2.bf16.msra.mxu0 0
        %857 = vmatprep.subr.bf16.mxu0 0
        %858 = vmatpush2.bf16.msra.mxu0 0
        %859 = vmatprep.subr.bf16.mxu0 0
        %860 = vmatpush2.bf16.msra.mxu0 0
        %861 = vmatprep.subr.bf16.mxu0 0
        %862 = vmatpush2.bf16.msra.mxu0 0
        %863 = vmatprep.subr.bf16.mxu0 0
        %864 = vmatpush2.bf16.msra.mxu0 0
        %865 = vmatprep.subr.bf16.mxu0 0
        %866 = vmatpush2.bf16.msra.mxu0 0
        %867 = vmatprep.mubr.bf16.mxu0 0
        %868 = vmatmul.mubr.bf16.gmra.mxu0 %v833
        %v869 = vpop.f32.mrf.mxu0
        %v870 = vadd.f32 %v818, %v869
        %v871 = vpop.f32.mrf.mxu0
        %v872 = vpop.f32.mrf.mxu0
        %v873 = vadd.f32 %v818, %v872
        %v874 = vpop.f32.mrf.mxu0
        %875 = vdwg.mxu0
        %v876 = vmul.f32 %v737, 0.35355338
        %878 = vrot.lane.b32.xlu0 %v876, 120
        %v879 = vpop.permute.xlu0 %878
        %881 = vrot.lane.b32.xlu0 %v876, 112
        %v882 = vpop.permute.xlu0 %881
        %884 = vrot.lane.b32.xlu0 %v876, 104
        %v885 = vpop.permute.xlu0 %884
        %v887 = vcombine.low %v876, %v882
        %v888 = vcombine.high %v876, %v882
        %v890 = vunpack.c.l.s4 1983009808
        %v891 = vunpack.c.0.s8 %v890
        %v892 = vlaneseq
        %v893 = vshrl.u32 %v892, 7
        %v894 = vsub.s32 %v891, %v893
        %v895 = vrot.slane %v887, %v894
        %v897 = vunpack.c.l.s4 1983009808
        %v898 = vunpack.c.0.s8 %v897
        %v899 = vlaneseq
        %v900 = vshrl.u32 %v899, 7
        %v901 = vsub.s32 %v898, %v900
        %v902 = vrot.slane %v888, %v901
        %v903 = vcombine.low %v879, %v885
        %v904 = vcombine.high %v879, %v885
        %v906 = vunpack.c.l.s4 1983009808
        %v907 = vunpack.c.0.s8 %v906
        %v908 = vlaneseq
        %v909 = vshrl.u32 %v908, 7
        %v910 = vsub.s32 %v907, %v909
        %v911 = vrot.slane %v903, %v910
        %v913 = vunpack.c.l.s4 1983009808
        %v914 = vunpack.c.0.s8 %v913
        %v915 = vlaneseq
        %v916 = vshrl.u32 %v915, 7
        %v917 = vsub.s32 %v914, %v916
        %v918 = vrot.slane %v904, %v917
        %v919 = vcombine.low %v895, %v911
        %v920 = vcombine.high %v895, %v911
        %v922 = vunpack.c.l.s4 1934713408
        %v923 = vunpack.c.0.s8 %v922
        %v924 = vlaneseq
        %v925 = vshrl.u32 %v924, 7
        %v926 = vsub.s32 %v923, %v925
        %v927 = vrot.slane %v919, %v926
        %v929 = vunpack.c.l.s4 1934713408
        %v930 = vunpack.c.0.s8 %v929
        %v931 = vlaneseq
        %v932 = vshrl.u32 %v931, 7
        %v933 = vsub.s32 %v930, %v932
        %v934 = vrot.slane %v920, %v933
        %v935 = vcombine.low %v902, %v918
        %v936 = vcombine.high %v902, %v918
        %v938 = vunpack.c.l.s4 1934713408
        %v939 = vunpack.c.0.s8 %v938
        %v940 = vlaneseq
        %v941 = vshrl.u32 %v940, 7
        %v942 = vsub.s32 %v939, %v941
        %v943 = vrot.slane %v935, %v942
        %v945 = vunpack.c.l.s4 1934713408
        %v946 = vunpack.c.0.s8 %v945
        %v947 = vlaneseq
        %v948 = vshrl.u32 %v947, 7
        %v949 = vsub.s32 %v946, %v948
        %v950 = vrot.slane %v936, %v949
        %v951 = vcombine.high %v927, 0.0
        %v952 = vcombine.high %v934, 0.0
        %v953 = vcombine.high %v943, 0.0
        %v954 = vcombine.high %v950, 0.0
        %v955 = vcombine.low %v927, %v934
        %v957 = vunpack.c.l.s4 1983009808
        %v958 = vunpack.c.0.s8 %v957
        %v959 = vlaneseq
        %v960 = vshrl.u32 %v959, 7
        %v961 = vsub.s32 %v958, %v960
        %v962 = vrot.slane %v955, %v961
        %v963 = vcombine.low %v951, %v952
        %v965 = vunpack.c.l.s4 1983009808
        %v966 = vunpack.c.0.s8 %v965
        %v967 = vlaneseq
        %v968 = vshrl.u32 %v967, 7
        %v969 = vsub.s32 %v966, %v968
        %v970 = vrot.slane %v963, %v969
        %v971 = vcombine.low %v943, %v950
        %v973 = vunpack.c.l.s4 1983009808
        %v974 = vunpack.c.0.s8 %v973
        %v975 = vlaneseq
        %v976 = vshrl.u32 %v975, 7
        %v977 = vsub.s32 %v974, %v976
        %v978 = vrot.slane %v971, %v977
        %v979 = vcombine.low %v953, %v954
        %v981 = vunpack.c.l.s4 1983009808
        %v982 = vunpack.c.0.s8 %v981
        %v983 = vlaneseq
        %v984 = vshrl.u32 %v983, 7
        %v985 = vsub.s32 %v982, %v984
        %v986 = vrot.slane %v979, %v985
        %v987 = vcombine.low %v962, %v970
        %v988 = vcombine.high %v962, %v970
        %v990 = vunpack.c.l.s4 1934713408
        %v991 = vunpack.c.0.s8 %v990
        %v992 = vlaneseq
        %v993 = vshrl.u32 %v992, 7
        %v994 = vsub.s32 %v991, %v993
        %v995 = vrot.slane %v987, %v994
        %v997 = vunpack.c.l.s4 1934713408
        %v998 = vunpack.c.0.s8 %v997
        %v999 = vlaneseq
        %v1000 = vshrl.u32 %v999, 7
        %v1001 = vsub.s32 %v998, %v1000
        %v1002 = vrot.slane %v988, %v1001
        %v1003 = vcombine.low %v978, %v986
        %v1004 = vcombine.high %v978, %v986
        %v1006 = vunpack.c.l.s4 1934713408
        %v1007 = vunpack.c.0.s8 %v1006
        %v1008 = vlaneseq
        %v1009 = vshrl.u32 %v1008, 7
        %v1010 = vsub.s32 %v1007, %v1009
        %v1011 = vrot.slane %v1003, %v1010
        %v1013 = vunpack.c.l.s4 1934713408
        %v1014 = vunpack.c.0.s8 %v1013
        %v1015 = vlaneseq
        %v1016 = vshrl.u32 %v1015, 7
        %v1017 = vsub.s32 %v1014, %v1016
        %v1018 = vrot.slane %v1004, %v1017
        %v1019 = vcombine.low %v995, %v1011
        %v1020 = vcombine.high %v995, %v1011
        %v1021 = vcombine.low %v1002, %v1018
        %v1022 = vcombine.high %v1002, %v1018
        %v1023 = vpack.c.bf16 %v1019, %v1019
        %v1024 = vpack.c.bf16 %v1020, %v1020
        %v1025 = vpack.c.bf16 %v1021, %v1021
        %v1026 = vpack.c.bf16 %v1022, %v1022
        %1029 = vrot.lane.b32.xlu0 %v803, 120
        %v1030 = vpop.permute.xlu0 %1029
        %1031 = vrot.lane.b32.xlu0 %v806, 120
        %v1032 = vpop.permute.xlu0 %1031
        %1035 = vrot.lane.b32.xlu0 %v803, 112
        %v1036 = vpop.permute.xlu0 %1035
        %1037 = vrot.lane.b32.xlu0 %v806, 112
        %v1038 = vpop.permute.xlu0 %1037
        %1041 = vrot.lane.b32.xlu0 %v803, 104
        %v1042 = vpop.permute.xlu0 %1041
        %1043 = vrot.lane.b32.xlu0 %v806, 104
        %v1044 = vpop.permute.xlu0 %1043
        %v1047 = vcombine.low %v803, %v1036
        %v1048 = vcombine.high %v803, %v1036
        %v1050 = vunpack.c.l.s4 1983009808
        %v1051 = vunpack.c.0.s8 %v1050
        %v1052 = vlaneseq
        %v1053 = vshrl.u32 %v1052, 7
        %v1054 = vsub.s32 %v1051, %v1053
        %v1055 = vrot.slane %v1047, %v1054
        %v1057 = vunpack.c.l.s4 1983009808
        %v1058 = vunpack.c.0.s8 %v1057
        %v1059 = vlaneseq
        %v1060 = vshrl.u32 %v1059, 7
        %v1061 = vsub.s32 %v1058, %v1060
        %v1062 = vrot.slane %v1048, %v1061
        %v1063 = vcombine.low %v1030, %v1042
        %v1064 = vcombine.high %v1030, %v1042
        %v1066 = vunpack.c.l.s4 1983009808
        %v1067 = vunpack.c.0.s8 %v1066
        %v1068 = vlaneseq
        %v1069 = vshrl.u32 %v1068, 7
        %v1070 = vsub.s32 %v1067, %v1069
        %v1071 = vrot.slane %v1063, %v1070
        %v1073 = vunpack.c.l.s4 1983009808
        %v1074 = vunpack.c.0.s8 %v1073
        %v1075 = vlaneseq
        %v1076 = vshrl.u32 %v1075, 7
        %v1077 = vsub.s32 %v1074, %v1076
        %v1078 = vrot.slane %v1064, %v1077
        %v1079 = vcombine.low %v1055, %v1071
        %v1080 = vcombine.high %v1055, %v1071
        %v1082 = vunpack.c.l.s4 1934713408
        %v1083 = vunpack.c.0.s8 %v1082
        %v1084 = vlaneseq
        %v1085 = vshrl.u32 %v1084, 7
        %v1086 = vsub.s32 %v1083, %v1085
        %v1087 = vrot.slane %v1079, %v1086
        %v1089 = vunpack.c.l.s4 1934713408
        %v1090 = vunpack.c.0.s8 %v1089
        %v1091 = vlaneseq
        %v1092 = vshrl.u32 %v1091, 7
        %v1093 = vsub.s32 %v1090, %v1092
        %v1094 = vrot.slane %v1080, %v1093
        %v1095 = vcombine.low %v1062, %v1078
        %v1096 = vcombine.high %v1062, %v1078
        %v1098 = vunpack.c.l.s4 1934713408
        %v1099 = vunpack.c.0.s8 %v1098
        %v1100 = vlaneseq
        %v1101 = vshrl.u32 %v1100, 7
        %v1102 = vsub.s32 %v1099, %v1101
        %v1103 = vrot.slane %v1095, %v1102
        %v1105 = vunpack.c.l.s4 1934713408
        %v1106 = vunpack.c.0.s8 %v1105
        %v1107 = vlaneseq
        %v1108 = vshrl.u32 %v1107, 7
        %v1109 = vsub.s32 %v1106, %v1108
        %v1110 = vrot.slane %v1096, %v1109
        %v1111 = vcombine.high %v1087, 0.0
        %v1112 = vcombine.high %v1094, 0.0
        %v1113 = vcombine.high %v1103, 0.0
        %v1114 = vcombine.high %v1110, 0.0
        %v1115 = vcombine.low %v806, %v1038
        %v1116 = vcombine.high %v806, %v1038
        %v1118 = vunpack.c.l.s4 1983009808
        %v1119 = vunpack.c.0.s8 %v1118
        %v1120 = vlaneseq
        %v1121 = vshrl.u32 %v1120, 7
        %v1122 = vsub.s32 %v1119, %v1121
        %v1123 = vrot.slane %v1115, %v1122
        %v1125 = vunpack.c.l.s4 1983009808
        %v1126 = vunpack.c.0.s8 %v1125
        %v1127 = vlaneseq
        %v1128 = vshrl.u32 %v1127, 7
        %v1129 = vsub.s32 %v1126, %v1128
        %v1130 = vrot.slane %v1116, %v1129
        %v1131 = vcombine.low %v1032, %v1044
        %v1132 = vcombine.high %v1032, %v1044
        %v1134 = vunpack.c.l.s4 1983009808
        %v1135 = vunpack.c.0.s8 %v1134
        %v1136 = vlaneseq
        %v1137 = vshrl.u32 %v1136, 7
        %v1138 = vsub.s32 %v1135, %v1137
        %v1139 = vrot.slane %v1131, %v1138
        %v1141 = vunpack.c.l.s4 1983009808
        %v1142 = vunpack.c.0.s8 %v1141
        %v1143 = vlaneseq
        %v1144 = vshrl.u32 %v1143, 7
        %v1145 = vsub.s32 %v1142, %v1144
        %v1146 = vrot.slane %v1132, %v1145
        %v1147 = vcombine.low %v1123, %v1139
        %v1148 = vcombine.high %v1123, %v1139
        %v1150 = vunpack.c.l.s4 1934713408
        %v1151 = vunpack.c.0.s8 %v1150
        %v1152 = vlaneseq
        %v1153 = vshrl.u32 %v1152, 7
        %v1154 = vsub.s32 %v1151, %v1153
        %v1155 = vrot.slane %v1147, %v1154
        %v1157 = vunpack.c.l.s4 1934713408
        %v1158 = vunpack.c.0.s8 %v1157
        %v1159 = vlaneseq
        %v1160 = vshrl.u32 %v1159, 7
        %v1161 = vsub.s32 %v1158, %v1160
        %v1162 = vrot.slane %v1148, %v1161
        %v1163 = vcombine.low %v1130, %v1146
        %v1164 = vcombine.high %v1130, %v1146
        %v1166 = vunpack.c.l.s4 1934713408
        %v1167 = vunpack.c.0.s8 %v1166
        %v1168 = vlaneseq
        %v1169 = vshrl.u32 %v1168, 7
        %v1170 = vsub.s32 %v1167, %v1169
        %v1171 = vrot.slane %v1163, %v1170
        %v1173 = vunpack.c.l.s4 1934713408
        %v1174 = vunpack.c.0.s8 %v1173
        %v1175 = vlaneseq
        %v1176 = vshrl.u32 %v1175, 7
        %v1177 = vsub.s32 %v1174, %v1176
        %v1178 = vrot.slane %v1164, %v1177
        %v1179 = vcombine.high %v1155, 0.0
        %v1180 = vcombine.high %v1162, 0.0
        %v1181 = vcombine.high %v1171, 0.0
        %v1182 = vcombine.high %v1178, 0.0
        %v1183 = vcombine.low %v1087, %v1094
        %v1185 = vunpack.c.l.s4 1983009808
        %v1186 = vunpack.c.0.s8 %v1185
        %v1187 = vlaneseq
        %v1188 = vshrl.u32 %v1187, 7
        %v1189 = vsub.s32 %v1186, %v1188
        %v1190 = vrot.slane %v1183, %v1189
        %v1191 = vcombine.low %v1111, %v1112
        %v1193 = vunpack.c.l.s4 1983009808
        %v1194 = vunpack.c.0.s8 %v1193
        %v1195 = vlaneseq
        %v1196 = vshrl.u32 %v1195, 7
        %v1197 = vsub.s32 %v1194, %v1196
        %v1198 = vrot.slane %v1191, %v1197
        %v1199 = vcombine.low %v1103, %v1110
        %v1201 = vunpack.c.l.s4 1983009808
        %v1202 = vunpack.c.0.s8 %v1201
        %v1203 = vlaneseq
        %v1204 = vshrl.u32 %v1203, 7
        %v1205 = vsub.s32 %v1202, %v1204
        %v1206 = vrot.slane %v1199, %v1205
        %v1207 = vcombine.low %v1113, %v1114
        %v1209 = vunpack.c.l.s4 1983009808
        %v1210 = vunpack.c.0.s8 %v1209
        %v1211 = vlaneseq
        %v1212 = vshrl.u32 %v1211, 7
        %v1213 = vsub.s32 %v1210, %v1212
        %v1214 = vrot.slane %v1207, %v1213
        %v1215 = vcombine.low %v1190, %v1198
        %v1216 = vcombine.high %v1190, %v1198
        %v1218 = vunpack.c.l.s4 1934713408
        %v1219 = vunpack.c.0.s8 %v1218
        %v1220 = vlaneseq
        %v1221 = vshrl.u32 %v1220, 7
        %v1222 = vsub.s32 %v1219, %v1221
        %v1223 = vrot.slane %v1215, %v1222
        %v1225 = vunpack.c.l.s4 1934713408
        %v1226 = vunpack.c.0.s8 %v1225
        %v1227 = vlaneseq
        %v1228 = vshrl.u32 %v1227, 7
        %v1229 = vsub.s32 %v1226, %v1228
        %v1230 = vrot.slane %v1216, %v1229
        %v1231 = vcombine.low %v1206, %v1214
        %v1232 = vcombine.high %v1206, %v1214
        %v1234 = vunpack.c.l.s4 1934713408
        %v1235 = vunpack.c.0.s8 %v1234
        %v1236 = vlaneseq
        %v1237 = vshrl.u32 %v1236, 7
        %v1238 = vsub.s32 %v1235, %v1237
        %v1239 = vrot.slane %v1231, %v1238
        %v1241 = vunpack.c.l.s4 1934713408
        %v1242 = vunpack.c.0.s8 %v1241
        %v1243 = vlaneseq
        %v1244 = vshrl.u32 %v1243, 7
        %v1245 = vsub.s32 %v1242, %v1244
        %v1246 = vrot.slane %v1232, %v1245
        %v1247 = vcombine.low %v1223, %v1239
        %v1248 = vcombine.high %v1223, %v1239
        %v1249 = vcombine.low %v1230, %v1246
        %v1250 = vcombine.high %v1230, %v1246
        %v1251 = vcombine.low %v1155, %v1162
        %v1253 = vunpack.c.l.s4 1983009808
        %v1254 = vunpack.c.0.s8 %v1253
        %v1255 = vlaneseq
        %v1256 = vshrl.u32 %v1255, 7
        %v1257 = vsub.s32 %v1254, %v1256
        %v1258 = vrot.slane %v1251, %v1257
        %v1259 = vcombine.low %v1179, %v1180
        %v1261 = vunpack.c.l.s4 1983009808
        %v1262 = vunpack.c.0.s8 %v1261
        %v1263 = vlaneseq
        %v1264 = vshrl.u32 %v1263, 7
        %v1265 = vsub.s32 %v1262, %v1264
        %v1266 = vrot.slane %v1259, %v1265
        %v1267 = vcombine.low %v1171, %v1178
        %v1269 = vunpack.c.l.s4 1983009808
        %v1270 = vunpack.c.0.s8 %v1269
        %v1271 = vlaneseq
        %v1272 = vshrl.u32 %v1271, 7
        %v1273 = vsub.s32 %v1270, %v1272
        %v1274 = vrot.slane %v1267, %v1273
        %v1275 = vcombine.low %v1181, %v1182
        %v1277 = vunpack.c.l.s4 1983009808
        %v1278 = vunpack.c.0.s8 %v1277
        %v1279 = vlaneseq
        %v1280 = vshrl.u32 %v1279, 7
        %v1281 = vsub.s32 %v1278, %v1280
        %v1282 = vrot.slane %v1275, %v1281
        %v1283 = vcombine.low %v1258, %v1266
        %v1284 = vcombine.high %v1258, %v1266
        %v1286 = vunpack.c.l.s4 1934713408
        %v1287 = vunpack.c.0.s8 %v1286
        %v1288 = vlaneseq
        %v1289 = vshrl.u32 %v1288, 7
        %v1290 = vsub.s32 %v1287, %v1289
        %v1291 = vrot.slane %v1283, %v1290
        %v1293 = vunpack.c.l.s4 1934713408
        %v1294 = vunpack.c.0.s8 %v1293
        %v1295 = vlaneseq
        %v1296 = vshrl.u32 %v1295, 7
        %v1297 = vsub.s32 %v1294, %v1296
        %v1298 = vrot.slane %v1284, %v1297
        %v1299 = vcombine.low %v1274, %v1282
        %v1300 = vcombine.high %v1274, %v1282
        %v1302 = vunpack.c.l.s4 1934713408
        %v1303 = vunpack.c.0.s8 %v1302
        %v1304 = vlaneseq
        %v1305 = vshrl.u32 %v1304, 7
        %v1306 = vsub.s32 %v1303, %v1305
        %v1307 = vrot.slane %v1299, %v1306
        %v1309 = vunpack.c.l.s4 1934713408
        %v1310 = vunpack.c.0.s8 %v1309
        %v1311 = vlaneseq
        %v1312 = vshrl.u32 %v1311, 7
        %v1313 = vsub.s32 %v1310, %v1312
        %v1314 = vrot.slane %v1300, %v1313
        %v1315 = vcombine.low %v1291, %v1307
        %v1316 = vcombine.high %v1291, %v1307
        %v1317 = vcombine.low %v1298, %v1314
        %v1318 = vcombine.high %v1298, %v1314
        %v1319 = vpack.c.bf16 %v1315, %v1247
        %v1320 = vpack.c.bf16 %v1316, %v1248
        %v1321 = vpack.c.bf16 %v1317, %v1249
        %v1322 = vpack.c.bf16 %v1318, %v1250
        %1325 = vrot.lane.b32.xlu0 %v870, 120
        %v1326 = vpop.permute.xlu0 %1325
        %1327 = vrot.lane.b32.xlu0 %v873, 120
        %v1328 = vpop.permute.xlu0 %1327
        %1331 = vrot.lane.b32.xlu0 %v870, 112
        %v1332 = vpop.permute.xlu0 %1331
        %1333 = vrot.lane.b32.xlu0 %v873, 112
        %v1334 = vpop.permute.xlu0 %1333
        %1337 = vrot.lane.b32.xlu0 %v870, 104
        %v1338 = vpop.permute.xlu0 %1337
        %1339 = vrot.lane.b32.xlu0 %v873, 104
        %v1340 = vpop.permute.xlu0 %1339
        %v1343 = vcombine.low %v870, %v1332
        %v1344 = vcombine.high %v870, %v1332
        %v1346 = vunpack.c.l.s4 1983009808
        %v1347 = vunpack.c.0.s8 %v1346
        %v1348 = vlaneseq
        %v1349 = vshrl.u32 %v1348, 7
        %v1350 = vsub.s32 %v1347, %v1349
        %v1351 = vrot.slane %v1343, %v1350
        %v1353 = vunpack.c.l.s4 1983009808
        %v1354 = vunpack.c.0.s8 %v1353
        %v1355 = vlaneseq
        %v1356 = vshrl.u32 %v1355, 7
        %v1357 = vsub.s32 %v1354, %v1356
        %v1358 = vrot.slane %v1344, %v1357
        %v1359 = vcombine.low %v1326, %v1338
        %v1360 = vcombine.high %v1326, %v1338
        %v1362 = vunpack.c.l.s4 1983009808
        %v1363 = vunpack.c.0.s8 %v1362
        %v1364 = vlaneseq
        %v1365 = vshrl.u32 %v1364, 7
        %v1366 = vsub.s32 %v1363, %v1365
        %v1367 = vrot.slane %v1359, %v1366
        %v1369 = vunpack.c.l.s4 1983009808
        %v1370 = vunpack.c.0.s8 %v1369
        %v1371 = vlaneseq
        %v1372 = vshrl.u32 %v1371, 7
        %v1373 = vsub.s32 %v1370, %v1372
        %v1374 = vrot.slane %v1360, %v1373
        %v1375 = vcombine.low %v1351, %v1367
        %v1376 = vcombine.high %v1351, %v1367
        %v1378 = vunpack.c.l.s4 1934713408
        %v1379 = vunpack.c.0.s8 %v1378
        %v1380 = vlaneseq
        %v1381 = vshrl.u32 %v1380, 7
        %v1382 = vsub.s32 %v1379, %v1381
        %v1383 = vrot.slane %v1375, %v1382
        %v1385 = vunpack.c.l.s4 1934713408
        %v1386 = vunpack.c.0.s8 %v1385
        %v1387 = vlaneseq
        %v1388 = vshrl.u32 %v1387, 7
        %v1389 = vsub.s32 %v1386, %v1388
        %v1390 = vrot.slane %v1376, %v1389
        %v1391 = vcombine.low %v1358, %v1374
        %v1392 = vcombine.high %v1358, %v1374
        %v1394 = vunpack.c.l.s4 1934713408
        %v1395 = vunpack.c.0.s8 %v1394
        %v1396 = vlaneseq
        %v1397 = vshrl.u32 %v1396, 7
        %v1398 = vsub.s32 %v1395, %v1397
        %v1399 = vrot.slane %v1391, %v1398
        %v1401 = vunpack.c.l.s4 1934713408
        %v1402 = vunpack.c.0.s8 %v1401
        %v1403 = vlaneseq
        %v1404 = vshrl.u32 %v1403, 7
        %v1405 = vsub.s32 %v1402, %v1404
        %v1406 = vrot.slane %v1392, %v1405
        %v1407 = vcombine.high %v1383, 0.0
        %v1408 = vcombine.high %v1390, 0.0
        %v1409 = vcombine.high %v1399, 0.0
        %v1410 = vcombine.high %v1406, 0.0
        %v1411 = vcombine.low %v873, %v1334
        %v1412 = vcombine.high %v873, %v1334
        %v1414 = vunpack.c.l.s4 1983009808
        %v1415 = vunpack.c.0.s8 %v1414
        %v1416 = vlaneseq
        %v1417 = vshrl.u32 %v1416, 7
        %v1418 = vsub.s32 %v1415, %v1417
        %v1419 = vrot.slane %v1411, %v1418
        %v1421 = vunpack.c.l.s4 1983009808
        %v1422 = vunpack.c.0.s8 %v1421
        %v1423 = vlaneseq
        %v1424 = vshrl.u32 %v1423, 7
        %v1425 = vsub.s32 %v1422, %v1424
        %v1426 = vrot.slane %v1412, %v1425
        %v1427 = vcombine.low %v1328, %v1340
        %v1428 = vcombine.high %v1328, %v1340
        %v1430 = vunpack.c.l.s4 1983009808
        %v1431 = vunpack.c.0.s8 %v1430
        %v1432 = vlaneseq
        %v1433 = vshrl.u32 %v1432, 7
        %v1434 = vsub.s32 %v1431, %v1433
        %v1435 = vrot.slane %v1427, %v1434
        %v1437 = vunpack.c.l.s4 1983009808
        %v1438 = vunpack.c.0.s8 %v1437
        %v1439 = vlaneseq
        %v1440 = vshrl.u32 %v1439, 7
        %v1441 = vsub.s32 %v1438, %v1440
        %v1442 = vrot.slane %v1428, %v1441
        %v1443 = vcombine.low %v1419, %v1435
        %v1444 = vcombine.high %v1419, %v1435
        %v1446 = vunpack.c.l.s4 1934713408
        %v1447 = vunpack.c.0.s8 %v1446
        %v1448 = vlaneseq
        %v1449 = vshrl.u32 %v1448, 7
        %v1450 = vsub.s32 %v1447, %v1449
        %v1451 = vrot.slane %v1443, %v1450
        %v1453 = vunpack.c.l.s4 1934713408
        %v1454 = vunpack.c.0.s8 %v1453
        %v1455 = vlaneseq
        %v1456 = vshrl.u32 %v1455, 7
        %v1457 = vsub.s32 %v1454, %v1456
        %v1458 = vrot.slane %v1444, %v1457
        %v1459 = vcombine.low %v1426, %v1442
        %v1460 = vcombine.high %v1426, %v1442
        %v1462 = vunpack.c.l.s4 1934713408
        %v1463 = vunpack.c.0.s8 %v1462
        %v1464 = vlaneseq
        %v1465 = vshrl.u32 %v1464, 7
        %v1466 = vsub.s32 %v1463, %v1465
        %v1467 = vrot.slane %v1459, %v1466
        %v1469 = vunpack.c.l.s4 1934713408
        %v1470 = vunpack.c.0.s8 %v1469
        %v1471 = vlaneseq
        %v1472 = vshrl.u32 %v1471, 7
        %v1473 = vsub.s32 %v1470, %v1472
        %v1474 = vrot.slane %v1460, %v1473
        %v1475 = vcombine.high %v1451, 0.0
        %v1476 = vcombine.high %v1458, 0.0
        %v1477 = vcombine.high %v1467, 0.0
        %v1478 = vcombine.high %v1474, 0.0
        %v1479 = vcombine.low %v1383, %v1390
        %v1481 = vunpack.c.l.s4 1983009808
        %v1482 = vunpack.c.0.s8 %v1481
        %v1483 = vlaneseq
        %v1484 = vshrl.u32 %v1483, 7
        %v1485 = vsub.s32 %v1482, %v1484
        %v1486 = vrot.slane %v1479, %v1485
        %v1487 = vcombine.low %v1407, %v1408
        %v1489 = vunpack.c.l.s4 1983009808
        %v1490 = vunpack.c.0.s8 %v1489
        %v1491 = vlaneseq
        %v1492 = vshrl.u32 %v1491, 7
        %v1493 = vsub.s32 %v1490, %v1492
        %v1494 = vrot.slane %v1487, %v1493
        %v1495 = vcombine.low %v1399, %v1406
        %v1497 = vunpack.c.l.s4 1983009808
        %v1498 = vunpack.c.0.s8 %v1497
        %v1499 = vlaneseq
        %v1500 = vshrl.u32 %v1499, 7
        %v1501 = vsub.s32 %v1498, %v1500
        %v1502 = vrot.slane %v1495, %v1501
        %v1503 = vcombine.low %v1409, %v1410
        %v1505 = vunpack.c.l.s4 1983009808
        %v1506 = vunpack.c.0.s8 %v1505
        %v1507 = vlaneseq
        %v1508 = vshrl.u32 %v1507, 7
        %v1509 = vsub.s32 %v1506, %v1508
        %v1510 = vrot.slane %v1503, %v1509
        %v1511 = vcombine.low %v1486, %v1494
        %v1512 = vcombine.high %v1486, %v1494
        %v1514 = vunpack.c.l.s4 1934713408
        %v1515 = vunpack.c.0.s8 %v1514
        %v1516 = vlaneseq
        %v1517 = vshrl.u32 %v1516, 7
        %v1518 = vsub.s32 %v1515, %v1517
        %v1519 = vrot.slane %v1511, %v1518
        %v1521 = vunpack.c.l.s4 1934713408
        %v1522 = vunpack.c.0.s8 %v1521
        %v1523 = vlaneseq
        %v1524 = vshrl.u32 %v1523, 7
        %v1525 = vsub.s32 %v1522, %v1524
        %v1526 = vrot.slane %v1512, %v1525
        %v1527 = vcombine.low %v1502, %v1510
        %v1528 = vcombine.high %v1502, %v1510
        %v1530 = vunpack.c.l.s4 1934713408
        %v1531 = vunpack.c.0.s8 %v1530
        %v1532 = vlaneseq
        %v1533 = vshrl.u32 %v1532, 7
        %v1534 = vsub.s32 %v1531, %v1533
        %v1535 = vrot.slane %v1527, %v1534
        %v1537 = vunpack.c.l.s4 1934713408
        %v1538 = vunpack.c.0.s8 %v1537
        %v1539 = vlaneseq
        %v1540 = vshrl.u32 %v1539, 7
        %v1541 = vsub.s32 %v1538, %v1540
        %v1542 = vrot.slane %v1528, %v1541
        %v1543 = vcombine.low %v1519, %v1535
        %v1544 = vcombine.high %v1519, %v1535
        %v1545 = vcombine.low %v1526, %v1542
        %v1546 = vcombine.high %v1526, %v1542
        %v1547 = vcombine.low %v1451, %v1458
        %v1549 = vunpack.c.l.s4 1983009808
        %v1550 = vunpack.c.0.s8 %v1549
        %v1551 = vlaneseq
        %v1552 = vshrl.u32 %v1551, 7
        %v1553 = vsub.s32 %v1550, %v1552
        %v1554 = vrot.slane %v1547, %v1553
        %v1555 = vcombine.low %v1475, %v1476
        %v1557 = vunpack.c.l.s4 1983009808
        %v1558 = vunpack.c.0.s8 %v1557
        %v1559 = vlaneseq
        %v1560 = vshrl.u32 %v1559, 7
        %v1561 = vsub.s32 %v1558, %v1560
        %v1562 = vrot.slane %v1555, %v1561
        %v1563 = vcombine.low %v1467, %v1474
        %v1565 = vunpack.c.l.s4 1983009808
        %v1566 = vunpack.c.0.s8 %v1565
        %v1567 = vlaneseq
        %v1568 = vshrl.u32 %v1567, 7
        %v1569 = vsub.s32 %v1566, %v1568
        %v1570 = vrot.slane %v1563, %v1569
        %v1571 = vcombine.low %v1477, %v1478
        %v1573 = vunpack.c.l.s4 1983009808
        %v1574 = vunpack.c.0.s8 %v1573
        %v1575 = vlaneseq
        %v1576 = vshrl.u32 %v1575, 7
        %v1577 = vsub.s32 %v1574, %v1576
        %v1578 = vrot.slane %v1571, %v1577
        %v1579 = vcombine.low %v1554, %v1562
        %v1580 = vcombine.high %v1554, %v1562
        %v1582 = vunpack.c.l.s4 1934713408
        %v1583 = vunpack.c.0.s8 %v1582
        %v1584 = vlaneseq
        %v1585 = vshrl.u32 %v1584, 7
        %v1586 = vsub.s32 %v1583, %v1585
        %v1587 = vrot.slane %v1579, %v1586
        %v1589 = vunpack.c.l.s4 1934713408
        %v1590 = vunpack.c.0.s8 %v1589
        %v1591 = vlaneseq
        %v1592 = vshrl.u32 %v1591, 7
        %v1593 = vsub.s32 %v1590, %v1592
        %v1594 = vrot.slane %v1580, %v1593
        %v1595 = vcombine.low %v1570, %v1578
        %v1596 = vcombine.high %v1570, %v1578
        %v1598 = vunpack.c.l.s4 1934713408
        %v1599 = vunpack.c.0.s8 %v1598
        %v1600 = vlaneseq
        %v1601 = vshrl.u32 %v1600, 7
        %v1602 = vsub.s32 %v1599, %v1601
        %v1603 = vrot.slane %v1595, %v1602
        %v1605 = vunpack.c.l.s4 1934713408
        %v1606 = vunpack.c.0.s8 %v1605
        %v1607 = vlaneseq
        %v1608 = vshrl.u32 %v1607, 7
        %v1609 = vsub.s32 %v1606, %v1608
        %v1610 = vrot.slane %v1596, %v1609
        %v1611 = vcombine.low %v1587, %v1603
        %v1612 = vcombine.high %v1587, %v1603
        %v1613 = vcombine.low %v1594, %v1610
        %v1614 = vcombine.high %v1594, %v1610
        %v1615 = vpack.c.bf16 %v1611, %v1543
        %v1616 = vpack.c.bf16 %v1612, %v1544
        %v1617 = vpack.c.bf16 %v1613, %v1545
        %v1618 = vpack.c.bf16 %v1614, %v1546
        %v1619 = vld [vmem:[%s661] sm:$0x1]
        %v1621 = vlaneseq
        %v1622 = vshrl.u32 %v1621, 7
        %v1623 = vsub.s32 0, %v1622
        %v1624 = vrot.slane %v1619, %v1623
        %vm1626 = vcmask 64512
        %v1628 = vsel %vm1626, %v1023, 0
        %v1631 = vsel %vm1626, %v1319, 0
        %1633 = vmatprep.subr.bf16.mxu0 0
        %1634 = vmatpush1.bf16.xpose.msra.mxu0 0
        %1635 = vmatprep.subr.bf16.mxu0 0
        %1636 = vmatpush1.bf16.xpose.msra.mxu0 0
        %1637 = vmatprep.subr.bf16.mxu0 0
        %1638 = vmatpush1.bf16.xpose.msra.mxu0 0
        %1639 = vmatprep.subr.bf16.mxu0 0
        %1640 = vmatpush1.bf16.xpose.msra.mxu0 0
        %1641 = vmatprep.subr.bf16.mxu0 0
        %1642 = vmatpush1.bf16.xpose.msra.mxu0 0
        %1643 = vmatprep.subr.bf16.mxu0 0
        %1644 = vmatpush1.bf16.xpose.msra.mxu0 0
        %1645 = vmatprep.subr.bf16.mxu0 0
        %1646 = vmatpush1.bf16.xpose.msra.mxu0 0
        %1647 = vmatprep.subr.bf16.mxu0 0
        %1648 = vmatpush1.bf16.xpose.msra.mxu0 %v1631
        %1649 = vmatprep.subr.bf16.mxu0 0
        %1650 = vmatpush2.bf16.xpose.msra.mxu0 0
        %1651 = vmatprep.subr.bf16.mxu0 0
        %1652 = vmatpush2.bf16.xpose.msra.mxu0 0
        %1653 = vmatprep.subr.bf16.mxu0 0
        %1654 = vmatpush2.bf16.xpose.msra.mxu0 0
        %1655 = vmatprep.subr.bf16.mxu0 0
        %1656 = vmatpush2.bf16.xpose.msra.mxu0 0
        %1657 = vmatprep.subr.bf16.mxu0 0
        %1658 = vmatpush2.bf16.xpose.msra.mxu0 0
        %1659 = vmatprep.subr.bf16.mxu0 0
        %1660 = vmatpush2.bf16.xpose.msra.mxu0 0
        %1661 = vmatprep.subr.bf16.mxu0 0
        %1662 = vmatpush2.bf16.xpose.msra.mxu0 0
        %1663 = vmatprep.subr.bf16.mxu0 0
        %1664 = vmatpush2.bf16.xpose.msra.mxu0 0
        %1665 = vmatprep.mubr.bf16.mxu0 0
        %1666 = vmatmul.mubr.bf16.gmra.mxu0 %v1628
        %v1667 = vpop.f32.mrf.mxu0
        %v1668 = vadd.f32 %v1624, %v1667
        %v1669 = vpop.f32.mrf.mxu0
        %v1670 = vpop.f32.mrf.mxu0
        %v1671 = vpop.f32.mrf.mxu0
        %1672 = vdwg.mxu0
        %v1674 = vsel %vm1626, %v1024, 0
        %v1677 = vsel %vm1626, %v1320, 0
        %1679 = vmatprep.subr.bf16.mxu0 0
        %1680 = vmatpush1.bf16.xpose.msra.mxu0 0
        %1681 = vmatprep.subr.bf16.mxu0 0
        %1682 = vmatpush1.bf16.xpose.msra.mxu0 0
        %1683 = vmatprep.subr.bf16.mxu0 0
        %1684 = vmatpush1.bf16.xpose.msra.mxu0 0
        %1685 = vmatprep.subr.bf16.mxu0 0
        %1686 = vmatpush1.bf16.xpose.msra.mxu0 0
        %1687 = vmatprep.subr.bf16.mxu0 0
        %1688 = vmatpush1.bf16.xpose.msra.mxu0 0
        %1689 = vmatprep.subr.bf16.mxu0 0
        %1690 = vmatpush1.bf16.xpose.msra.mxu0 0
        %1691 = vmatprep.subr.bf16.mxu0 0
        %1692 = vmatpush1.bf16.xpose.msra.mxu0 0
        %1693 = vmatprep.subr.bf16.mxu0 0
        %1694 = vmatpush1.bf16.xpose.msra.mxu0 %v1677
        %1695 = vmatprep.subr.bf16.mxu0 0
        %1696 = vmatpush2.bf16.xpose.msra.mxu0 0
        %1697 = vmatprep.subr.bf16.mxu0 0
        %1698 = vmatpush2.bf16.xpose.msra.mxu0 0
        %1699 = vmatprep.subr.bf16.mxu0 0
        %1700 = vmatpush2.bf16.xpose.msra.mxu0 0
        %1701 = vmatprep.subr.bf16.mxu0 0
        %1702 = vmatpush2.bf16.xpose.msra.mxu0 0
        %1703 = vmatprep.subr.bf16.mxu0 0
        %1704 = vmatpush2.bf16.xpose.msra.mxu0 0
        %1705 = vmatprep.subr.bf16.mxu0 0
        %1706 = vmatpush2.bf16.xpose.msra.mxu0 0
        %1707 = vmatprep.subr.bf16.mxu0 0
        %1708 = vmatpush2.bf16.xpose.msra.mxu0 0
        %1709 = vmatprep.subr.bf16.mxu0 0
        %1710 = vmatpush2.bf16.xpose.msra.mxu0 0
        %1711 = vmatprep.mubr.bf16.mxu0 0
        %1712 = vmatmul.mubr.bf16.gmra.mxu0 %v1674
        %v1713 = vpop.f32.mrf.mxu0
        %v1714 = vadd.f32 %v1624, %v1713
        %v1715 = vpop.f32.mrf.mxu0
        %v1716 = vpop.f32.mrf.mxu0
        %v1717 = vpop.f32.mrf.mxu0
        %1718 = vdwg.mxu0
        %v1720 = vsel %vm1626, %v1025, 0
        %v1723 = vsel %vm1626, %v1321, 0
        %1725 = vmatprep.subr.bf16.mxu0 0
        %1726 = vmatpush1.bf16.xpose.msra.mxu0 0
        %1727 = vmatprep.subr.bf16.mxu0 0
        %1728 = vmatpush1.bf16.xpose.msra.mxu0 0
        %1729 = vmatprep.subr.bf16.mxu0 0
        %1730 = vmatpush1.bf16.xpose.msra.mxu0 0
        %1731 = vmatprep.subr.bf16.mxu0 0
        %1732 = vmatpush1.bf16.xpose.msra.mxu0 0
        %1733 = vmatprep.subr.bf16.mxu0 0
        %1734 = vmatpush1.bf16.xpose.msra.mxu0 0
        %1735 = vmatprep.subr.bf16.mxu0 0
        %1736 = vmatpush1.bf16.xpose.msra.mxu0 0
        %1737 = vmatprep.subr.bf16.mxu0 0
        %1738 = vmatpush1.bf16.xpose.msra.mxu0 0
        %1739 = vmatprep.subr.bf16.mxu0 0
        %1740 = vmatpush1.bf16.xpose.msra.mxu0 %v1723
        %1741 = vmatprep.subr.bf16.mxu0 0
        %1742 = vmatpush2.bf16.xpose.msra.mxu0 0
        %1743 = vmatprep.subr.bf16.mxu0 0
        %1744 = vmatpush2.bf16.xpose.msra.mxu0 0
        %1745 = vmatprep.subr.bf16.mxu0 0
        %1746 = vmatpush2.bf16.xpose.msra.mxu0 0
        %1747 = vmatprep.subr.bf16.mxu0 0
        %1748 = vmatpush2.bf16.xpose.msra.mxu0 0
        %1749 = vmatprep.subr.bf16.mxu0 0
        %1750 = vmatpush2.bf16.xpose.msra.mxu0 0
        %1751 = vmatprep.subr.bf16.mxu0 0
        %1752 = vmatpush2.bf16.xpose.msra.mxu0 0
        %1753 = vmatprep.subr.bf16.mxu0 0
        %1754 = vmatpush2.bf16.xpose.msra.mxu0 0
        %1755 = vmatprep.subr.bf16.mxu0 0
        %1756 = vmatpush2.bf16.xpose.msra.mxu0 0
        %1757 = vmatprep.mubr.bf16.mxu0 0
        %1758 = vmatmul.mubr.bf16.gmra.mxu0 %v1720
        %v1759 = vpop.f32.mrf.mxu0
        %v1760 = vadd.f32 %v1624, %v1759
        %v1761 = vpop.f32.mrf.mxu0
        %v1762 = vpop.f32.mrf.mxu0
        %v1763 = vpop.f32.mrf.mxu0
        %1764 = vdwg.mxu0
        %v1766 = vsel %vm1626, %v1026, 0
        %v1769 = vsel %vm1626, %v1322, 0
        %1771 = vmatprep.subr.bf16.mxu0 0
        %1772 = vmatpush1.bf16.xpose.msra.mxu0 0
        %1773 = vmatprep.subr.bf16.mxu0 0
        %1774 = vmatpush1.bf16.xpose.msra.mxu0 0
        %1775 = vmatprep.subr.bf16.mxu0 0
        %1776 = vmatpush1.bf16.xpose.msra.mxu0 0
        %1777 = vmatprep.subr.bf16.mxu0 0
        %1778 = vmatpush1.bf16.xpose.msra.mxu0 0
        %1779 = vmatprep.subr.bf16.mxu0 0
        %1780 = vmatpush1.bf16.xpose.msra.mxu0 0
        %1781 = vmatprep.subr.bf16.mxu0 0
        %1782 = vmatpush1.bf16.xpose.msra.mxu0 0
        %1783 = vmatprep.subr.bf16.mxu0 0
        %1784 = vmatpush1.bf16.xpose.msra.mxu0 0
        %1785 = vmatprep.subr.bf16.mxu0 0
        %1786 = vmatpush1.bf16.xpose.msra.mxu0 %v1769
        %1787 = vmatprep.subr.bf16.mxu0 0
        %1788 = vmatpush2.bf16.xpose.msra.mxu0 0
        %1789 = vmatprep.subr.bf16.mxu0 0
        %1790 = vmatpush2.bf16.xpose.msra.mxu0 0
        %1791 = vmatprep.subr.bf16.mxu0 0
        %1792 = vmatpush2.bf16.xpose.msra.mxu0 0
        %1793 = vmatprep.subr.bf16.mxu0 0
        %1794 = vmatpush2.bf16.xpose.msra.mxu0 0
        %1795 = vmatprep.subr.bf16.mxu0 0
        %1796 = vmatpush2.bf16.xpose.msra.mxu0 0
        %1797 = vmatprep.subr.bf16.mxu0 0
        %1798 = vmatpush2.bf16.xpose.msra.mxu0 0
        %1799 = vmatprep.subr.bf16.mxu0 0
        %1800 = vmatpush2.bf16.xpose.msra.mxu0 0
        %1801 = vmatprep.subr.bf16.mxu0 0
        %1802 = vmatpush2.bf16.xpose.msra.mxu0 0
        %1803 = vmatprep.mubr.bf16.mxu0 0
        %1804 = vmatmul.mubr.bf16.gmra.mxu0 %v1766
        %v1805 = vpop.f32.mrf.mxu0
        %v1806 = vadd.f32 %v1624, %v1805
        %v1807 = vpop.f32.mrf.mxu0
        %v1808 = vpop.f32.mrf.mxu0
        %v1809 = vpop.f32.mrf.mxu0
        %1810 = vdwg.mxu0
        %vm1811 = vcmask 130048
        %v1812 = vsel %vm1811, %v1668, -inf
        %1813 = vmax.xlane.f32.xlu0 %v1812
        %v1814 = vpop.xlane.xlu0 %1813
        %v1815 = vsel %vm1811, %v1714, -inf
        %1816 = vmax.xlane.f32.xlu0 %v1815
        %v1817 = vpop.xlane.xlu0 %1816
        %v1818 = vsel %vm1811, %v1760, -inf
        %1819 = vmax.xlane.f32.xlu0 %v1818
        %v1820 = vpop.xlane.xlu0 %1819
        %v1821 = vsel %vm1811, %v1806, -inf
        %1822 = vmax.xlane.f32.xlu0 %v1821
        %v1823 = vpop.xlane.xlu0 %1822
        %v1824 = vsub.f32 %v1668, %v1814
        %v1825 = vsub.f32 %v1714, %v1817
        %v1826 = vsub.f32 %v1760, %v1820
        %v1827 = vsub.f32 %v1806, %v1823
        %v1828 = vmul.f32 %v1824, 1.442695
        %v1829 = vpow.pop %v1828
        %v1830 = vmul.f32 %v1825, 1.442695
        %v1831 = vpow.pop %v1830
        %v1832 = vmul.f32 %v1826, 1.442695
        %v1833 = vpow.pop %v1832
        %v1834 = vmul.f32 %v1827, 1.442695
        %v1835 = vpow.pop %v1834
        %v1836 = vsel %vm1811, %v1829, 0.0
        %1837 = vadd.xlane.f32.xlu0 %v1836
        %v1838 = vpop.xlane.xlu0 %1837
        %v1839 = vsel %vm1811, %v1831, 0.0
        %1840 = vadd.xlane.f32.xlu0 %v1839
        %v1841 = vpop.xlane.xlu0 %1840
        %v1842 = vsel %vm1811, %v1833, 0.0
        %1843 = vadd.xlane.f32.xlu0 %v1842
        %v1844 = vpop.xlane.xlu0 %1843
        %v1845 = vsel %vm1811, %v1835, 0.0
        %1846 = vadd.xlane.f32.xlu0 %v1845
        %v1847 = vpop.xlane.xlu0 %1846
        %v1848 = vrcp.pop %v1838
        %v1849 = vrcp.pop %v1841
        %v1850 = vrcp.pop %v1844
        %v1851 = vrcp.pop %v1847
        %v1852 = vmul.f32 %v1829, %v1848
        %v1853 = vmul.f32 %v1831, %v1849
        %v1854 = vmul.f32 %v1833, %v1850
        %v1855 = vmul.f32 %v1835, %v1851
        %v1856 = vpack.c.bf16 %v1852, %v1852
        %v1857 = vpack.c.bf16 %v1853, %v1853
        %v1858 = vpack.c.bf16 %v1854, %v1854
        %v1859 = vpack.c.bf16 %v1855, %v1855
        %v1861 = vsel %vm1811, %v1856, 0
        %1863 = vmatprep.subr.bf16.mxu0 0
        %1864 = vmatpush1.bf16.msra.mxu0 0
        %1865 = vmatprep.subr.bf16.mxu0 0
        %1866 = vmatpush1.bf16.msra.mxu0 0
        %1867 = vmatprep.subr.bf16.mxu0 0
        %1868 = vmatpush1.bf16.msra.mxu0 0
        %1869 = vmatprep.subr.bf16.mxu0 0
        %1870 = vmatpush1.bf16.msra.mxu0 0
        %1871 = vmatprep.subr.bf16.mxu0 0
        %1872 = vmatpush1.bf16.msra.mxu0 0
        %1873 = vmatprep.subr.bf16.mxu0 0
        %1874 = vmatpush1.bf16.msra.mxu0 0
        %1875 = vmatprep.subr.bf16.mxu0 0
        %1876 = vmatpush1.bf16.msra.mxu0 0
        %1877 = vmatprep.subr.bf16.mxu0 0
        %1878 = vmatpush1.bf16.msra.mxu0 %v1615
        %1879 = vmatprep.subr.bf16.mxu0 0
        %1880 = vmatpush2.bf16.msra.mxu0 0
        %1881 = vmatprep.subr.bf16.mxu0 0
        %1882 = vmatpush2.bf16.msra.mxu0 0
        %1883 = vmatprep.subr.bf16.mxu0 0
        %1884 = vmatpush2.bf16.msra.mxu0 0
        %1885 = vmatprep.subr.bf16.mxu0 0
        %1886 = vmatpush2.bf16.msra.mxu0 0
        %1887 = vmatprep.subr.bf16.mxu0 0
        %1888 = vmatpush2.bf16.msra.mxu0 0
        %1889 = vmatprep.subr.bf16.mxu0 0
        %1890 = vmatpush2.bf16.msra.mxu0 0
        %1891 = vmatprep.subr.bf16.mxu0 0
        %1892 = vmatpush2.bf16.msra.mxu0 0
        %1893 = vmatprep.subr.bf16.mxu0 0
        %1894 = vmatpush2.bf16.msra.mxu0 0
        %1895 = vmatprep.mubr.bf16.mxu0 0
        %1896 = vmatmul.mubr.bf16.gmra.mxu0 %v1861
        %v1897 = vpop.f32.mrf.mxu0
        %v1898 = vadd.f32 0.0, %v1897
        %v1899 = vpop.f32.mrf.mxu0
        %v1900 = vpop.f32.mrf.mxu0
        %v1901 = vpop.f32.mrf.mxu0
        %1902 = vdwg.mxu0
        %v1904 = vsel %vm1811, %v1857, 0
        %1906 = vmatprep.subr.bf16.mxu0 0
        %1907 = vmatpush1.bf16.msra.mxu0 0
        %1908 = vmatprep.subr.bf16.mxu0 0
        %1909 = vmatpush1.bf16.msra.mxu0 0
        %1910 = vmatprep.subr.bf16.mxu0 0
        %1911 = vmatpush1.bf16.msra.mxu0 0
        %1912 = vmatprep.subr.bf16.mxu0 0
        %1913 = vmatpush1.bf16.msra.mxu0 0
        %1914 = vmatprep.subr.bf16.mxu0 0
        %1915 = vmatpush1.bf16.msra.mxu0 0
        %1916 = vmatprep.subr.bf16.mxu0 0
        %1917 = vmatpush1.bf16.msra.mxu0 0
        %1918 = vmatprep.subr.bf16.mxu0 0
        %1919 = vmatpush1.bf16.msra.mxu0 0
        %1920 = vmatprep.subr.bf16.mxu0 0
        %1921 = vmatpush1.bf16.msra.mxu0 %v1616
        %1922 = vmatprep.subr.bf16.mxu0 0
        %1923 = vmatpush2.bf16.msra.mxu0 0
        %1924 = vmatprep.subr.bf16.mxu0 0
        %1925 = vmatpush2.bf16.msra.mxu0 0
        %1926 = vmatprep.subr.bf16.mxu0 0
        %1927 = vmatpush2.bf16.msra.mxu0 0
        %1928 = vmatprep.subr.bf16.mxu0 0
        %1929 = vmatpush2.bf16.msra.mxu0 0
        %1930 = vmatprep.subr.bf16.mxu0 0
        %1931 = vmatpush2.bf16.msra.mxu0 0
        %1932 = vmatprep.subr.bf16.mxu0 0
        %1933 = vmatpush2.bf16.msra.mxu0 0
        %1934 = vmatprep.subr.bf16.mxu0 0
        %1935 = vmatpush2.bf16.msra.mxu0 0
        %1936 = vmatprep.subr.bf16.mxu0 0
        %1937 = vmatpush2.bf16.msra.mxu0 0
        %1938 = vmatprep.mubr.bf16.mxu0 0
        %1939 = vmatmul.mubr.bf16.gmra.mxu0 %v1904
        %v1940 = vpop.f32.mrf.mxu0
        %v1941 = vadd.f32 0.0, %v1940
        %v1942 = vpop.f32.mrf.mxu0
        %v1943 = vpop.f32.mrf.mxu0
        %v1944 = vpop.f32.mrf.mxu0
        %1945 = vdwg.mxu0
        %v1947 = vsel %vm1811, %v1858, 0
        %1949 = vmatprep.subr.bf16.mxu0 0
        %1950 = vmatpush1.bf16.msra.mxu0 0
        %1951 = vmatprep.subr.bf16.mxu0 0
        %1952 = vmatpush1.bf16.msra.mxu0 0
        %1953 = vmatprep.subr.bf16.mxu0 0
        %1954 = vmatpush1.bf16.msra.mxu0 0
        %1955 = vmatprep.subr.bf16.mxu0 0
        %1956 = vmatpush1.bf16.msra.mxu0 0
        %1957 = vmatprep.subr.bf16.mxu0 0
        %1958 = vmatpush1.bf16.msra.mxu0 0
        %1959 = vmatprep.subr.bf16.mxu0 0
        %1960 = vmatpush1.bf16.msra.mxu0 0
        %1961 = vmatprep.subr.bf16.mxu0 0
        %1962 = vmatpush1.bf16.msra.mxu0 0
        %1963 = vmatprep.subr.bf16.mxu0 0
        %1964 = vmatpush1.bf16.msra.mxu0 %v1617
        %1965 = vmatprep.subr.bf16.mxu0 0
        %1966 = vmatpush2.bf16.msra.mxu0 0
        %1967 = vmatprep.subr.bf16.mxu0 0
        %1968 = vmatpush2.bf16.msra.mxu0 0
        %1969 = vmatprep.subr.bf16.mxu0 0
        %1970 = vmatpush2.bf16.msra.mxu0 0
        %1971 = vmatprep.subr.bf16.mxu0 0
        %1972 = vmatpush2.bf16.msra.mxu0 0
        %1973 = vmatprep.subr.bf16.mxu0 0
        %1974 = vmatpush2.bf16.msra.mxu0 0
        %1975 = vmatprep.subr.bf16.mxu0 0
        %1976 = vmatpush2.bf16.msra.mxu0 0
        %1977 = vmatprep.subr.bf16.mxu0 0
        %1978 = vmatpush2.bf16.msra.mxu0 0
        %1979 = vmatprep.subr.bf16.mxu0 0
        %1980 = vmatpush2.bf16.msra.mxu0 0
        %1981 = vmatprep.mubr.bf16.mxu0 0
        %1982 = vmatmul.mubr.bf16.gmra.mxu0 %v1947
        %v1983 = vpop.f32.mrf.mxu0
        %v1984 = vadd.f32 0.0, %v1983
        %v1985 = vpop.f32.mrf.mxu0
        %v1986 = vpop.f32.mrf.mxu0
        %v1987 = vpop.f32.mrf.mxu0
        %1988 = vdwg.mxu0
        %v1990 = vsel %vm1811, %v1859, 0
        %1992 = vmatprep.subr.bf16.mxu0 0
        %1993 = vmatpush1.bf16.msra.mxu0 0
        %1994 = vmatprep.subr.bf16.mxu0 0
        %1995 = vmatpush1.bf16.msra.mxu0 0
        %1996 = vmatprep.subr.bf16.mxu0 0
        %1997 = vmatpush1.bf16.msra.mxu0 0
        %1998 = vmatprep.subr.bf16.mxu0 0
        %1999 = vmatpush1.bf16.msra.mxu0 0
        %2000 = vmatprep.subr.bf16.mxu0 0
        %2001 = vmatpush1.bf16.msra.mxu0 0
        %2002 = vmatprep.subr.bf16.mxu0 0
        %2003 = vmatpush1.bf16.msra.mxu0 0
        %2004 = vmatprep.subr.bf16.mxu0 0
        %2005 = vmatpush1.bf16.msra.mxu0 0
        %2006 = vmatprep.subr.bf16.mxu0 0
        %2007 = vmatpush1.bf16.msra.mxu0 %v1618
        %2008 = vmatprep.subr.bf16.mxu0 0
        %2009 = vmatpush2.bf16.msra.mxu0 0
        %2010 = vmatprep.subr.bf16.mxu0 0
        %2011 = vmatpush2.bf16.msra.mxu0 0
        %2012 = vmatprep.subr.bf16.mxu0 0
        %2013 = vmatpush2.bf16.msra.mxu0 0
        %2014 = vmatprep.subr.bf16.mxu0 0
        %2015 = vmatpush2.bf16.msra.mxu0 0
        %2016 = vmatprep.subr.bf16.mxu0 0
        %2017 = vmatpush2.bf16.msra.mxu0 0
        %2018 = vmatprep.subr.bf16.mxu0 0
        %2019 = vmatpush2.bf16.msra.mxu0 0
        %2020 = vmatprep.subr.bf16.mxu0 0
        %2021 = vmatpush2.bf16.msra.mxu0 0
        %2022 = vmatprep.subr.bf16.mxu0 0
        %2023 = vmatpush2.bf16.msra.mxu0 0
        %2024 = vmatprep.mubr.bf16.mxu0 0
        %2025 = vmatmul.mubr.bf16.gmra.mxu0 %v1990
        %v2026 = vpop.f32.mrf.mxu0
        %v2027 = vadd.f32 0.0, %v2026
        %v2028 = vpop.f32.mrf.mxu0
        %v2029 = vpop.f32.mrf.mxu0
        %v2030 = vpop.f32.mrf.mxu0
        %2031 = vdwg.mxu0
        %v2032 = vpack.c.bf16 %v1898, %v1898
        %v2034 = vunpack.c.l.s4 1983009808
        %v2035 = vunpack.c.0.s8 %v2034
        %v2036 = vlaneseq
        %v2037 = vshrl.u32 %v2036, 7
        %v2038 = vsub.s32 %v2035, %v2037
        %v2039 = vrot.slane %v2032, %v2038
        %v2040 = vpack.c.bf16 %v1984, %v1984
        %v2042 = vunpack.c.l.s4 1983009808
        %v2043 = vunpack.c.0.s8 %v2042
        %v2044 = vlaneseq
        %v2045 = vshrl.u32 %v2044, 7
        %v2046 = vsub.s32 %v2043, %v2045
        %v2047 = vrot.slane %v2040, %v2046
        %v2048 = vcombine.low %v2039, %v2047
        %v2049 = vcombine.high %v2039, %v2047
        %v2051 = vunpack.c.l.s4 1934713408
        %v2052 = vunpack.c.0.s8 %v2051
        %v2053 = vlaneseq
        %v2054 = vshrl.u32 %v2053, 7
        %v2055 = vsub.s32 %v2052, %v2054
        %v2056 = vrot.slane %v2048, %v2055
        %v2058 = vunpack.c.l.s4 1934713408
        %v2059 = vunpack.c.0.s8 %v2058
        %v2060 = vlaneseq
        %v2061 = vshrl.u32 %v2060, 7
        %v2062 = vsub.s32 %v2059, %v2061
        %v2063 = vrot.slane %v2049, %v2062
        %v2064 = vcombine.high %v2056, 0
        %v2065 = vcombine.high %v2063, 0
        %v2066 = vpack.c.bf16 %v1941, %v1941
        %v2068 = vunpack.c.l.s4 1983009808
        %v2069 = vunpack.c.0.s8 %v2068
        %v2070 = vlaneseq
        %v2071 = vshrl.u32 %v2070, 7
        %v2072 = vsub.s32 %v2069, %v2071
        %v2073 = vrot.slane %v2066, %v2072
        %v2074 = vpack.c.bf16 %v2027, %v2027
        %v2076 = vunpack.c.l.s4 1983009808
        %v2077 = vunpack.c.0.s8 %v2076
        %v2078 = vlaneseq
        %v2079 = vshrl.u32 %v2078, 7
        %v2080 = vsub.s32 %v2077, %v2079
        %v2081 = vrot.slane %v2074, %v2080
        %v2082 = vcombine.low %v2073, %v2081
        %v2083 = vcombine.high %v2073, %v2081
        %v2085 = vunpack.c.l.s4 1934713408
        %v2086 = vunpack.c.0.s8 %v2085
        %v2087 = vlaneseq
        %v2088 = vshrl.u32 %v2087, 7
        %v2089 = vsub.s32 %v2086, %v2088
        %v2090 = vrot.slane %v2082, %v2089
        %v2092 = vunpack.c.l.s4 1934713408
        %v2093 = vunpack.c.0.s8 %v2092
        %v2094 = vlaneseq
        %v2095 = vshrl.u32 %v2094, 7
        %v2096 = vsub.s32 %v2093, %v2095
        %v2097 = vrot.slane %v2083, %v2096
        %v2098 = vcombine.high %v2090, 0
        %v2099 = vcombine.high %v2097, 0
        %v2102 = vpack.i.b16 %v2090, %v2056
        %v2104 = vshrl.u32 %v2056, 16
        %v2105 = vshrl.u32 %v2090, 16
        %v2106 = vpack.i.b16 %v2105, %v2104
        %v2110 = vpack.i.b16 %v2098, %v2064
        %v2112 = vshrl.u32 %v2064, 16
        %v2113 = vshrl.u32 %v2098, 16
        %v2114 = vpack.i.b16 %v2113, %v2112
        %v2118 = vpack.i.b16 %v2097, %v2063
        %v2120 = vshrl.u32 %v2063, 16
        %v2121 = vshrl.u32 %v2097, 16
        %v2122 = vpack.i.b16 %v2121, %v2120
        %v2126 = vpack.i.b16 %v2099, %v2065
        %v2128 = vshrl.u32 %v2065, 16
        %v2129 = vshrl.u32 %v2099, 16
        %v2130 = vpack.i.b16 %v2129, %v2128
        %v2132 = vcombine.low %v2102, %v2118
        %v2134 = vunpack.c.l.s4 1983009808
        %v2135 = vunpack.c.0.s8 %v2134
        %v2136 = vlaneseq
        %v2137 = vshrl.u32 %v2136, 7
        %v2138 = vsub.s32 %v2135, %v2137
        %v2139 = vrot.slane %v2132, %v2138
        %v2140 = vcombine.low %v2110, %v2126
        %v2142 = vunpack.c.l.s4 1983009808
        %v2143 = vunpack.c.0.s8 %v2142
        %v2144 = vlaneseq
        %v2145 = vshrl.u32 %v2144, 7
        %v2146 = vsub.s32 %v2143, %v2145
        %v2147 = vrot.slane %v2140, %v2146
        %v2148 = vcombine.low %v2139, %v2147
        %v2150 = vunpack.c.l.s4 1934713408
        %v2151 = vunpack.c.0.s8 %v2150
        %v2152 = vlaneseq
        %v2153 = vshrl.u32 %v2152, 7
        %v2154 = vsub.s32 %v2151, %v2153
        %v2155 = vrot.slane %v2148, %v2154
        %v2156 = vcombine.high %v2155, 0
        %v2157 = vcombine.low %v2106, %v2122
        %v2159 = vunpack.c.l.s4 1983009808
        %v2160 = vunpack.c.0.s8 %v2159
        %v2161 = vlaneseq
        %v2162 = vshrl.u32 %v2161, 7
        %v2163 = vsub.s32 %v2160, %v2162
        %v2164 = vrot.slane %v2157, %v2163
        %v2165 = vcombine.low %v2114, %v2130
        %v2167 = vunpack.c.l.s4 1983009808
        %v2168 = vunpack.c.0.s8 %v2167
        %v2169 = vlaneseq
        %v2170 = vshrl.u32 %v2169, 7
        %v2171 = vsub.s32 %v2168, %v2170
        %v2172 = vrot.slane %v2165, %v2171
        %v2173 = vcombine.low %v2164, %v2172
        %v2175 = vunpack.c.l.s4 1934713408
        %v2176 = vunpack.c.0.s8 %v2175
        %v2177 = vlaneseq
        %v2178 = vshrl.u32 %v2177, 7
        %v2179 = vsub.s32 %v2176, %v2178
        %v2180 = vrot.slane %v2173, %v2179
        %v2181 = vcombine.high %v2180, 0
        %v2184 = vpack.i.b16 %v2180, %v2155
        %v2185 = vshrl.u32 %v2155, 16
        %v2186 = vshrl.u32 %v2180, 16
        %v2187 = vpack.i.b16 %v2186, %v2185
        %v2190 = vpack.i.b16 %v2181, %v2156
        %v2191 = vshrl.u32 %v2156, 16
        %v2192 = vshrl.u32 %v2181, 16
        %v2193 = vpack.i.b16 %v2192, %v2191
        %2194 = vrot.lane.b32.xlu0 %v2187, 8
        %v2195 = vpop.permute.xlu0 %2194
        %2196 = vrot.lane.b32.xlu0 %v2190, 16
        %v2197 = vpop.permute.xlu0 %2196
        %2198 = vrot.lane.b32.xlu0 %v2193, 24
        %v2199 = vpop.permute.xlu0 %2198
        %v2202 = vsel %vm1626, %v2184, %v2195
        %v2204 = vsel %vm1811, %v2202, %v2197
        %vm2205 = vcmask 195584
        %v2207 = vsel %vm2205, %v2204, %v2199
        %v2208 = vld [vmem:[#allocation14] sm:$0xf]
        %v2209 = vld [vmem:[#allocation14 + $0x4] sm:$0xf]
        %v2210 = vld [vmem:[#allocation14 + $0x8] sm:$0xf]
        %v2211 = vld [vmem:[#allocation14 + $0xc] sm:$0xf]
        %v2212 = vld [vmem:[%s12] sm:$0x1]
        %v2214 = vlaneseq
        %v2215 = vshrl.u32 %v2214, 7
        %v2216 = vsub.s32 0, %v2215
        %v2217 = vrot.slane %v2212, %v2216
        %v2223 = vunpack.c.l.b16 %v2208
        %v2224 = vunpack.c.l.b16 %v2209
        %v2225 = vunpack.c.l.b16 %v2210
        %v2226 = vunpack.c.l.b16 %v2211
        %v2227 = vpack.c.b16 %v2224, %v2223
        %v2228 = vpack.c.b16 %v2226, %v2225
        %v2231 = vsel %vm698, %v2207, 0
        %2233 = vmatprep.subr.bf16.mxu0 0
        %2234 = vmatpush1.bf16.msra.mxu0 0
        %2235 = vmatprep.subr.bf16.mxu0 0
        %2236 = vmatpush1.bf16.msra.mxu0 0
        %2237 = vmatprep.subr.bf16.mxu0 0
        %2238 = vmatpush1.bf16.msra.mxu0 0
        %2239 = vmatprep.subr.bf16.mxu0 0
        %2240 = vmatpush1.bf16.msra.mxu0 0
        %2241 = vmatprep.subr.bf16.mxu0 0
        %2242 = vmatpush1.bf16.msra.mxu0 0
        %2243 = vmatprep.subr.bf16.mxu0 0
        %2244 = vmatpush1.bf16.msra.mxu0 0
        %2245 = vmatprep.subr.bf16.mxu0 0
        %2246 = vmatpush1.bf16.msra.mxu0 %v2228
        %2247 = vmatprep.subr.bf16.mxu0 0
        %2248 = vmatpush1.bf16.msra.mxu0 %v2227
        %2249 = vmatprep.subr.bf16.mxu0 0
        %2250 = vmatpush2.bf16.msra.mxu0 0
        %2251 = vmatprep.subr.bf16.mxu0 0
        %2252 = vmatpush2.bf16.msra.mxu0 0
        %2253 = vmatprep.subr.bf16.mxu0 0
        %2254 = vmatpush2.bf16.msra.mxu0 0
        %2255 = vmatprep.subr.bf16.mxu0 0
        %2256 = vmatpush2.bf16.msra.mxu0 0
        %2257 = vmatprep.subr.bf16.mxu0 0
        %2258 = vmatpush2.bf16.msra.mxu0 0
        %2259 = vmatprep.subr.bf16.mxu0 0
        %2260 = vmatpush2.bf16.msra.mxu0 0
        %2261 = vmatprep.subr.bf16.mxu0 0
        %2262 = vmatpush2.bf16.msra.mxu0 0
        %2263 = vmatprep.subr.bf16.mxu0 0
        %2264 = vmatpush2.bf16.msra.mxu0 0
        %2265 = vmatprep.mubr.bf16.mxu0 0
        %2266 = vmatmul.mubr.bf16.gmra.mxu0 %v2231
        %v2267 = vpop.f32.mrf.mxu0
        %v2268 = vadd.f32 %v2217, %v2267
        %v2269 = vpop.f32.mrf.mxu0
        %v2270 = vpop.f32.mrf.mxu0
        %v2271 = vpop.f32.mrf.mxu0
        %2272 = vdwg.mxu0
        %v2273 = vmul.f32 %v663, %v2268
        %v2274 = vmul.f32 %v2273, %v2268
        %2275 = vst.msk [vmem:[%s658] sm:$0xff] %vm698, %v2274
        %s2276 = sand.u32 %s362, 1
        %s2277 = scalar_lea.sflag [#allocation4], %s2276
        %s2278 = sand.u32 %s362, 1
        %s2279 = smul.addr %s2278, 8
        %s2280 = scalar_lea.vmem [#allocation16], %s2279
        // Predicated region
        $region105: #{tpu_custom_call.1} parent=71 // pred_check
          %p2281 = pneg %p372
        $region106: #{tpu_custom_call.1} parent=71 // pred_check_branch
          %2283 = sbr.rel (%p2281) target = $region108
        $region107: #{tpu_custom_call.1} parent=71 // pred_region
          %s2285 = ssub.s32 128, 128
          %2286 = vsyncadd %s2277, %s2285
          %s2287 = sadd.s32 %s43, %s42
          %s2288 = smul.addr %s2287, 128
          %s2289 = scalar_lea.hbm %s13, %s2288
          %s2291 = sshll.u32 %s2280, 4
          %s2292 = int_to_ptr.vmem [resolvable:$true] %s2291
          %2294 = dma.vmem_to_hbm [thread:$0]  %s2292, 128, %s2289, %s2277
        $region108: #{tpu_custom_call.1} parent=71 // pred_fallthru
          _
      $region72: #{tpu_custom_call.1} parent=5 // pred_fallthru
        _
      %p2295 = scmp.le.s32.totalorder 2, %s33
      // Predicated region
      $region109: #{tpu_custom_call.1} parent=5 // pred_check
        %p2296 = pneg %p2295
      $region110: #{tpu_custom_call.1} parent=5 // pred_check_branch
        %2298 = sbr.rel (%p2296) target = $region112
      $region111: #{tpu_custom_call.1} parent=5 // pred_region
        %s2299 = ssub.s32 %s33, 2
        // Predicated region
        $region113: #{tpu_custom_call.1} parent=111 // pred_check
          %p2300 = pneg %p378
        $region114: #{tpu_custom_call.1} parent=111 // pred_check_branch
          %2302 = sbr.rel (%p2300) target = $region116
        $region115: #{tpu_custom_call.1} parent=111 // pred_region
          %s2303 = sand.u32 %s363, 1
          %s2304 = scalar_lea.sflag [#allocation4], %s2303
          %s2305 = sand.u32 %s363, 1
          %s2306 = smul.addr %s2305, 8
          %s2307 = scalar_lea.vmem [#allocation16], %s2306
          %2308 = dma.done %s2304, 128
        $region116: #{tpu_custom_call.1} parent=111 // pred_fallthru
          _
      $region112: #{tpu_custom_call.1} parent=5 // pred_fallthru
        _
    $region6: #{tpu_custom_call.1} parent=1 // loop_footer
      %s37 = sadd.s32 1, %s33
    $region7: #{tpu_custom_call.1} parent=1 // loop_footer_branch
      %32 = sbr.rel target = $region3
    $region8: #{tpu_custom_call.1} parent=1 // loop_exit
      _
    %2309 = vsyncpa [#allocation3], 1
    %s2310 = scalar_lea.sflag [#allocation3], 1
    %2311 = vsyncpa %s2310, 1
    %2312 = vsyncpa [#allocation6], 1
    %s2313 = scalar_lea.sflag [#allocation6], 1
    %2314 = vsyncpa %s2313, 1
    %2315 = vsyncpa [#allocation9], 1
    %s2316 = scalar_lea.sflag [#allocation9], 1
    %2317 = vsyncpa %s2316, 1
    %2318 = vsyncpa [#allocation12], 1
    %2319 = vsyncpa [#allocation15], 1
    %2320 = vsyncpa [#allocation4], 1
    %s2321 = scalar_lea.sflag [#allocation4], 1
    %2322 = vsyncpa %s2321, 1

</llo_original>
